<compile_context>
chip_gen: v7x
topology: tpu7x:2x2x1
jax: 0.10.0
libtpu: 0.0.40
codegen_flags: <defaults>
</compile_context>

<pallas_src>
import functools
import math

import jax
import jax.numpy as jnp
from jax import lax
from jax.experimental import pallas as pl
from jax.experimental.pallas import tpu as pltpu


# Tap order matches kernel-height-major PyTorch weights: t = kh*3 + kw, (dh,dw)=(kh-1,kw-1).
_TAPS = tuple((dh, dw) for dh in (-1, 0, 1) for dw in (-1, 0, 1))


def _tap_shift(x, mask_row, dh, dw, W, HW):
    """Zero-padded 3x3-conv tap: out[r, h*W + w] = x[r, (h+dh)*W + (w+dw)] (0 outside).

    x        : (rows, HW) f32, spatial dim flattened row-major on the lane axis.
    mask_row : (1, HW) f32 0/1 validity mask for this tap (precomputed on host).
    """
    if dh == 0 and dw == 0:
        return x
    off = dh * W + dw
    # pltpu.roll follows jnp.roll semantics: rolled[p] = x[(p - shift) % HW],
    # so shift = -off gives rolled[p] = x[p + off]; the mask zeroes the wrap-around.
    rolled = pltpu.roll(x, shift=(-off) % HW, axis=1)
    return rolled * mask_row


def cbam_kernel(mask_ref, x_ref,
                w1_ref, b1_ref,
                w2a_ref, b2a_ref, w2b_ref, b2b_ref,
                w3a_ref, b3a_ref, w3b_ref, b3b_ref,
                out_ref, col_ref, *, H, W):
    C = x_ref.shape[1]
    HW = H * W
    # Note: if the surrounding model were bf16, the matmul operands could stay
    # bf16 (accumulate f32 via preferred_element_type); inputs here are f32.
    x = x_ref[0].astype(jnp.float32)                               # (C, HW)

    # ---- conv1: 3x3, C -> C, pad 1.  Build im2col (9C, HW) with lane rolls,
    #      then a single MXU matmul with a lane-dense (C, HW) result.
    for t, (dh, dw) in enumerate(_TAPS):
        col_ref[t * C:(t + 1) * C, :] = _tap_shift(
            x, mask_ref[t:t + 1, :], dh, dw, W, HW)
    y1 = (jnp.dot(w1_ref[...], col_ref[...],
                  preferred_element_type=jnp.float32)
          + b1_ref[...])                                           # (C, HW)

    # ---- channel attention: shared 1x1-conv MLP on global avg & max pooled
    #      features, both pooled vectors pushed through the MXU together (C, 2).
    avg = jnp.sum(y1, axis=1, keepdims=True) * (1.0 / HW)          # (C, 1)
    mx = jnp.max(y1, axis=1, keepdims=True)                        # (C, 1)
    col_sel = lax.broadcasted_iota(jnp.int32, (C, 2), 1)
    pooled = jnp.where(col_sel == 0, avg, mx)                      # (C, 2) = [avg | max]
    hid = jnp.maximum(
        jnp.dot(w2a_ref[...], pooled, preferred_element_type=jnp.float32)
        + b2a_ref[...], 0.0)                                       # (C, 2)
    logits2 = (jnp.dot(w2b_ref[...], hid, preferred_element_type=jnp.float32)
               + b2b_ref[...])                                     # (C, 2)
    c_logit = logits2[:, 0:1] + logits2[:, 1:2]                    # (C, 1)
    c_att = pl.reciprocal(1.0 + jnp.exp(-c_logit), approx=True)    # sigmoid (EUP)
    x2 = y1 * c_att                                                # (C, HW)

    # ---- spatial attention: channel mean/max planes -> 3x3 conv (2->16) + ReLU
    #      -> 3x3 conv (16->1) -> sigmoid.  All on the VPU (no tiny MXU matmuls).
    sp_mean = jnp.sum(x2, axis=0, keepdims=True) * (1.0 / C)       # (1, HW)
    sp_max = jnp.max(x2, axis=0, keepdims=True)                    # (1, HW)

    # conv3a: per tap, two outer-product FMAs (16,1)x(1,HW) accumulated on VPU.
    acc3a = b3a_ref[...]                                           # (16, 1) -> bcast
    for t, (dh, dw) in enumerate(_TAPS):
        m = mask_ref[t:t + 1, :]
        sm = _tap_shift(sp_mean, m, dh, dw, W, HW)                 # (1, HW)
        sx = _tap_shift(sp_max, m, dh, dw, W, HW)                  # (1, HW)
        acc3a = (acc3a
                 + w3a_ref[:, 2 * t:2 * t + 1] * sm
                 + w3a_ref[:, 2 * t + 1:2 * t + 2] * sx)           # (16, HW)
    h3 = jnp.maximum(acc3a, 0.0)                                   # (16, HW)

    # conv3b: contract the 16 channels per tap first (weighted sublane reduction),
    # then shift + accumulate the 9 tap planes.
    s_logit = b3b_ref[...]                                         # (1, 1) -> bcast
    for t, (dh, dw) in enumerate(_TAPS):
        g = jnp.sum(w3b_ref[:, t:t + 1] * h3, axis=0, keepdims=True)   # (1, HW)
        s_logit = s_logit + _tap_shift(g, mask_ref[t:t + 1, :], dh, dw, W, HW)
    s_att = pl.reciprocal(1.0 + jnp.exp(-s_logit), approx=True)    # sigmoid (EUP)

    out_ref[0] = (x2 * s_att).astype(out_ref.dtype)                # lane-dense store


def cbam_forward(x_nchw, params):
    """CBAM forward. x_nchw: (B, C, H, W); params in PyTorch layouts."""
    (w1, b1, w2a, b2a, w2b, b2b, w3a, b3a, w3b, b3b) = params
    B, C, H, W = x_nchw.shape
    HW = H * W
    x = x_nchw.reshape(B, C, HW)            # free reshape: spatial dim on lanes

    # Kernel-side weight layouts (tap-major columns, lane-dense where it matters).
    w1_k = jnp.transpose(w1, (0, 2, 3, 1)).reshape(C, 9 * C)   # [co, t*C + ci]
    b1_k = b1.reshape(C, 1)
    w2a_k = w2a.reshape(C, C)
    b2a_k = b2a.reshape(C, 1)
    w2b_k = w2b.reshape(C, C)
    b2b_k = b2b.reshape(C, 1)
    w3a_k = jnp.transpose(w3a, (0, 2, 3, 1)).reshape(16, 18)   # [co, t*2 + ci]
    b3a_k = b3a.reshape(16, 1)
    w3b_k = w3b.reshape(16, 9)                                 # [ci, t]
    b3b_k = b3b.reshape(1, 1)

    # Per-tap 0/1 boundary masks for the zero-padded 3x3 convs (shared by all
    # three convs), built on the host so the kernel needs no int div/mod.
    hh = jnp.arange(HW, dtype=jnp.int32) // W
    ww = jnp.arange(HW, dtype=jnp.int32) % W
    mask_rows = []
    for dh, dw in _TAPS:
        valid = ((hh + dh >= 0) & (hh + dh < H) &
                 (ww + dw >= 0) & (ww + dw < W))
        mask_rows.append(valid.astype(jnp.float32))
    masks = jnp.stack(mask_rows, axis=0)                       # (9, HW)

    def full2d(shape):
        return pl.BlockSpec(shape, lambda b: (0, 0))

    out = pl.pallas_call(
        functools.partial(cbam_kernel, H=H, W=W),
        out_shape=jax.ShapeDtypeStruct((B, C, HW), x.dtype),
        grid_spec=pltpu.PrefetchScalarGridSpec(
            num_scalar_prefetch=0,
            grid=(B,),
            in_specs=[
                full2d(masks.shape),
                pl.BlockSpec((1, C, HW), lambda b: (b, 0, 0)),
                full2d(w1_k.shape), full2d(b1_k.shape),
                full2d(w2a_k.shape), full2d(b2a_k.shape),
                full2d(w2b_k.shape), full2d(b2b_k.shape),
                full2d(w3a_k.shape), full2d(b3a_k.shape),
                full2d(w3b_k.shape), full2d(b3b_k.shape),
            ],
            out_specs=pl.BlockSpec((1, C, HW), lambda b: (b, 0, 0)),
            # Only scratch: the conv1 im2col buffer (9C x HW f32, fully rewritten
            # every grid step, so the "parallel" batch axis stays independent).
            scratch_shapes=[pltpu.VMEM((9 * C, HW), jnp.float32)],
        ),
        compiler_params=pltpu.CompilerParams(
            dimension_semantics=("parallel",)),   # v7x: shard batch over both TCs
    )(masks, x, w1_k, b1_k, w2a_k, b2a_k, w2b_k, b2b_k,
      w3a_k, b3a_k, w3b_k, b3b_k)

    return out.reshape(B, C, H, W)


def cbam_reference(x, params):
    """Pure-JAX (XLA) reference of the PyTorch CBAM forward, for validation."""
    (w1, b1, w2a, b2a, w2b, b2b, w3a, b3a, w3b, b3b) = params

    def conv(x, w, b, pad):
        y = lax.conv_general_dilated(
            x, w, window_strides=(1, 1), padding=[(pad, pad), (pad, pad)],
            dimension_numbers=("NCHW", "OIHW", "NCHW"))
        return y + b.reshape(1, -1, 1, 1)

    y1 = conv(x, w1, b1, 1)
    avg = jnp.mean(y1, axis=(2, 3), keepdims=True)
    mxp = jnp.max(y1, axis=(2, 3), keepdims=True)

    def mlp(v):
        return conv(jax.nn.relu(conv(v, w2a, b2a, 0)), w2b, b2b, 0)

    c = jax.nn.sigmoid(mlp(avg) + mlp(mxp))
    x2 = y1 * c
    sp = jnp.concatenate([jnp.mean(x2, axis=1, keepdims=True),
                          jnp.max(x2, axis=1, keepdims=True)], axis=1)
    s = jax.nn.sigmoid(conv(jax.nn.relu(conv(sp, w3a, b3a, 1)), w3b, b3b, 1))
    return x2 * s


def kaiming_uniform(key, cout, cin, kh, kw):
    # nn.init.kaiming_uniform_ defaults: gain=sqrt(2), fan_in = cin*kh*kw.
    fan_in = cin * kh * kw
    bound = math.sqrt(2.0) * math.sqrt(3.0 / fan_in)
    return jax.random.uniform(key, (cout, cin, kh, kw), jnp.float32, -bound, bound)


if __name__ == "__main__":
    B, C, H, W = 2, 4, 16, 16
    key = jax.random.PRNGKey(0)
    ks = jax.random.split(key, 6)

    x = jax.random.normal(ks[0], (B, C, H, W), jnp.float32)

    # conv1: Conv2d(c, c, 3, 1, 1)
    w1 = kaiming_uniform(ks[1], C, C, 3, 3)
    b1 = jnp.zeros((C,), jnp.float32)
    # conv2: ConvRelu(c, c, 1, 1, 0) -> Conv(c, c, 1, 1, 0)
    w2a = kaiming_uniform(ks[2], C, C, 1, 1)
    b2a = jnp.zeros((C,), jnp.float32)
    w2b = kaiming_uniform(ks[3], C, C, 1, 1)
    b2b = jnp.zeros((C,), jnp.float32)
    # conv3: ConvRelu(2, 16, 3, 1, 1) -> Conv(16, 1, 3, 1, 1)
    w3a = kaiming_uniform(ks[4], 16, 2, 3, 3)
    b3a = jnp.zeros((16,), jnp.float32)
    w3b = kaiming_uniform(ks[5], 1, 16, 3, 3)
    b3b = jnp.zeros((1,), jnp.float32)

    params = (w1, b1, w2a, b2a, w2b, b2b, w3a, b3a, w3b, b3b)

    y = cbam_forward(x, params)
    jax.block_until_ready(y)
    assert y.shape == (B, C, H, W)

    # Cross-check against a pure-JAX reference of the PyTorch module.  Loose
    # tolerance: the in-kernel sigmoids use the EUP approximate reciprocal.
    y_ref = cbam_reference(x, params)
    err = float(jnp.max(jnp.abs(y - y_ref)))
    assert err < 5e-2, f"max abs error vs reference too large: {err}"

    print("KERNEL_OK")
</pallas_src>

<mosaic_0001>
module attributes {stable_mosaic.version = 11 : i64} {
  func.func @cbam_kernel(%arg0: i32, %arg1: memref<9x256xf32, #tpu.memory_space<vmem>>, %arg2: memref<1x4x256xf32, #tpu.memory_space<vmem>>, %arg3: memref<4x36xf32, #tpu.memory_space<vmem>>, %arg4: memref<4x1xf32, #tpu.memory_space<vmem>>, %arg5: memref<4x4xf32, #tpu.memory_space<vmem>>, %arg6: memref<4x1xf32, #tpu.memory_space<vmem>>, %arg7: memref<4x4xf32, #tpu.memory_space<vmem>>, %arg8: memref<4x1xf32, #tpu.memory_space<vmem>>, %arg9: memref<16x18xf32, #tpu.memory_space<vmem>>, %arg10: memref<16x1xf32, #tpu.memory_space<vmem>>, %arg11: memref<16x9xf32, #tpu.memory_space<vmem>>, %arg12: memref<1x1xf32, #tpu.memory_space<vmem>>, %arg13: memref<1x4x256xf32, #tpu.memory_space<vmem>>, %arg14: memref<36x256xf32, #tpu.memory_space<vmem>>) attributes {dimension_semantics = [#tpu.dimension_semantics<parallel>], iteration_bounds = array<i64: 2>, scalar_prefetch = 0 : i64, scratch_operands = 1 : i64, tpu.core_type = #tpu.core_type<tc>, window_params = [{pipeline_mode = #tpu.pipeline_mode<synchronous>, transform_indices = @transform_0, window_bounds = array<i64: 9, 256>}, {transform_indices = @transform_1, window_bounds = array<i64: 1, 4, 256>}, {pipeline_mode = #tpu.pipeline_mode<synchronous>, transform_indices = @transform_2, window_bounds = array<i64: 4, 36>}, {pipeline_mode = #tpu.pipeline_mode<synchronous>, transform_indices = @transform_3, window_bounds = array<i64: 4, 1>}, {pipeline_mode = #tpu.pipeline_mode<synchronous>, transform_indices = @transform_4, window_bounds = array<i64: 4, 4>}, {pipeline_mode = #tpu.pipeline_mode<synchronous>, transform_indices = @transform_5, window_bounds = array<i64: 4, 1>}, {pipeline_mode = #tpu.pipeline_mode<synchronous>, transform_indices = @transform_6, window_bounds = array<i64: 4, 4>}, {pipeline_mode = #tpu.pipeline_mode<synchronous>, transform_indices = @transform_7, window_bounds = array<i64: 4, 1>}, {pipeline_mode = #tpu.pipeline_mode<synchronous>, transform_indices = @transform_8, window_bounds = array<i64: 16, 18>}, {pipeline_mode = #tpu.pipeline_mode<synchronous>, transform_indices = @transform_9, window_bounds = array<i64: 16, 1>}, {pipeline_mode = #tpu.pipeline_mode<synchronous>, transform_indices = @transform_10, window_bounds = array<i64: 16, 9>}, {pipeline_mode = #tpu.pipeline_mode<synchronous>, transform_indices = @transform_11, window_bounds = array<i64: 1, 1>}, {transform_indices = @transform_12, window_bounds = array<i64: 1, 4, 256>}]} {
    %c0 = arith.constant 0 : index
    %c0_0 = arith.constant 0 : index
    %c0_1 = arith.constant 0 : index
    %0 = vector.load %arg2[%c0, %c0_0, %c0_1] : memref<1x4x256xf32, #tpu.memory_space<vmem>>, vector<1x4x256xf32>
    %1 = vector.shape_cast %0 : vector<1x4x256xf32> to vector<4x256xf32>
    %c0_2 = arith.constant 0 : index
    %c0_3 = arith.constant 0 : index
    %2 = vector.load %arg1[%c0_2, %c0_3] : memref<9x256xf32, #tpu.memory_space<vmem>>, vector<1x256xf32>
    %c17_i32 = arith.constant 17 : i32
    %3 = tpu.dynamic_rotate %1 by %c17_i32 dim 1 : vector<4x256xf32>, i32 -> vector<4x256xf32>
    %4 = vector.broadcast %2 : vector<1x256xf32> to vector<4x256xf32>
    %5 = arith.mulf %3, %4 : vector<4x256xf32>
    %c0_4 = arith.constant 0 : index
    %c0_5 = arith.constant 0 : index
    %6 = vector.load %arg14[%c0_4, %c0_5] : memref<36x256xf32, #tpu.memory_space<vmem>>, vector<4x256xf32>
    tpu.vector_store %arg14[%c0_4, %c0_5], %5 {strides = array<i32>} : memref<36x256xf32, #tpu.memory_space<vmem>>, vector<4x256xf32>,
    %c1 = arith.constant 1 : index
    %c0_6 = arith.constant 0 : index
    %7 = vector.load %arg1[%c1, %c0_6] : memref<9x256xf32, #tpu.memory_space<vmem>>, vector<1x256xf32>
    %c16_i32 = arith.constant 16 : i32
    %8 = tpu.dynamic_rotate %1 by %c16_i32 dim 1 : vector<4x256xf32>, i32 -> vector<4x256xf32>
    %9 = vector.broadcast %7 : vector<1x256xf32> to vector<4x256xf32>
    %10 = arith.mulf %8, %9 : vector<4x256xf32>
    %c4 = arith.constant 4 : index
    %c0_7 = arith.constant 0 : index
    %11 = vector.load %arg14[%c4, %c0_7] : memref<36x256xf32, #tpu.memory_space<vmem>>, vector<4x256xf32>
    tpu.vector_store %arg14[%c4, %c0_7], %10 {strides = array<i32>} : memref<36x256xf32, #tpu.memory_space<vmem>>, vector<4x256xf32>,
    %c2 = arith.constant 2 : index
    %c0_8 = arith.constant 0 : index
    %12 = vector.load %arg1[%c2, %c0_8] : memref<9x256xf32, #tpu.memory_space<vmem>>, vector<1x256xf32>
    %c15_i32 = arith.constant 15 : i32
    %13 = tpu.dynamic_rotate %1 by %c15_i32 dim 1 : vector<4x256xf32>, i32 -> vector<4x256xf32>
    %14 = vector.broadcast %12 : vector<1x256xf32> to vector<4x256xf32>
    %15 = arith.mulf %13, %14 : vector<4x256xf32>
    %c8 = arith.constant 8 : index
    %c0_9 = arith.constant 0 : index
    %16 = vector.load %arg14[%c8, %c0_9] : memref<36x256xf32, #tpu.memory_space<vmem>>, vector<4x256xf32>
    tpu.vector_store %arg14[%c8, %c0_9], %15 {strides = array<i32>} : memref<36x256xf32, #tpu.memory_space<vmem>>, vector<4x256xf32>,
    %c3 = arith.constant 3 : index
    %c0_10 = arith.constant 0 : index
    %17 = vector.load %arg1[%c3, %c0_10] : memref<9x256xf32, #tpu.memory_space<vmem>>, vector<1x256xf32>
    %c1_i32 = arith.constant 1 : i32
    %18 = tpu.dynamic_rotate %1 by %c1_i32 dim 1 : vector<4x256xf32>, i32 -> vector<4x256xf32>
    %19 = vector.broadcast %17 : vector<1x256xf32> to vector<4x256xf32>
    %20 = arith.mulf %18, %19 : vector<4x256xf32>
    %c12 = arith.constant 12 : index
    %c0_11 = arith.constant 0 : index
    %21 = vector.load %arg14[%c12, %c0_11] : memref<36x256xf32, #tpu.memory_space<vmem>>, vector<4x256xf32>
    tpu.vector_store %arg14[%c12, %c0_11], %20 {strides = array<i32>} : memref<36x256xf32, #tpu.memory_space<vmem>>, vector<4x256xf32>,
    %c16 = arith.constant 16 : index
    %c0_12 = arith.constant 0 : index
    %22 = vector.load %arg14[%c16, %c0_12] : memref<36x256xf32, #tpu.memory_space<vmem>>, vector<4x256xf32>
    tpu.vector_store %arg14[%c16, %c0_12], %1 {strides = array<i32>} : memref<36x256xf32, #tpu.memory_space<vmem>>, vector<4x256xf32>,
    %c5 = arith.constant 5 : index
    %c0_13 = arith.constant 0 : index
    %23 = vector.load %arg1[%c5, %c0_13] : memref<9x256xf32, #tpu.memory_space<vmem>>, vector<1x256xf32>
    %c255_i32 = arith.constant 255 : i32
    %24 = tpu.dynamic_rotate %1 by %c255_i32 dim 1 : vector<4x256xf32>, i32 -> vector<4x256xf32>
    %25 = vector.broadcast %23 : vector<1x256xf32> to vector<4x256xf32>
    %26 = arith.mulf %24, %25 : vector<4x256xf32>
    %c20 = arith.constant 20 : index
    %c0_14 = arith.constant 0 : index
    %27 = vector.load %arg14[%c20, %c0_14] : memref<36x256xf32, #tpu.memory_space<vmem>>, vector<4x256xf32>
    tpu.vector_store %arg14[%c20, %c0_14], %26 {strides = array<i32>} : memref<36x256xf32, #tpu.memory_space<vmem>>, vector<4x256xf32>,
    %c6 = arith.constant 6 : index
    %c0_15 = arith.constant 0 : index
    %28 = vector.load %arg1[%c6, %c0_15] : memref<9x256xf32, #tpu.memory_space<vmem>>, vector<1x256xf32>
    %c241_i32 = arith.constant 241 : i32
    %29 = tpu.dynamic_rotate %1 by %c241_i32 dim 1 : vector<4x256xf32>, i32 -> vector<4x256xf32>
    %30 = vector.broadcast %28 : vector<1x256xf32> to vector<4x256xf32>
    %31 = arith.mulf %29, %30 : vector<4x256xf32>
    %c24 = arith.constant 24 : index
    %c0_16 = arith.constant 0 : index
    %32 = vector.load %arg14[%c24, %c0_16] : memref<36x256xf32, #tpu.memory_space<vmem>>, vector<4x256xf32>
    tpu.vector_store %arg14[%c24, %c0_16], %31 {strides = array<i32>} : memref<36x256xf32, #tpu.memory_space<vmem>>, vector<4x256xf32>,
    %c7 = arith.constant 7 : index
    %c0_17 = arith.constant 0 : index
    %33 = vector.load %arg1[%c7, %c0_17] : memref<9x256xf32, #tpu.memory_space<vmem>>, vector<1x256xf32>
    %c240_i32 = arith.constant 240 : i32
    %34 = tpu.dynamic_rotate %1 by %c240_i32 dim 1 : vector<4x256xf32>, i32 -> vector<4x256xf32>
    %35 = vector.broadcast %33 : vector<1x256xf32> to vector<4x256xf32>
    %36 = arith.mulf %34, %35 : vector<4x256xf32>
    %c28 = arith.constant 28 : index
    %c0_18 = arith.constant 0 : index
    %37 = vector.load %arg14[%c28, %c0_18] : memref<36x256xf32, #tpu.memory_space<vmem>>, vector<4x256xf32>
    tpu.vector_store %arg14[%c28, %c0_18], %36 {strides = array<i32>} : memref<36x256xf32, #tpu.memory_space<vmem>>, vector<4x256xf32>,
    %c8_19 = arith.constant 8 : index
    %c0_20 = arith.constant 0 : index
    %38 = vector.load %arg1[%c8_19, %c0_20] : memref<9x256xf32, #tpu.memory_space<vmem>>, vector<1x256xf32>
    %c239_i32 = arith.constant 239 : i32
    %39 = tpu.dynamic_rotate %1 by %c239_i32 dim 1 : vector<4x256xf32>, i32 -> vector<4x256xf32>
    %40 = vector.broadcast %38 : vector<1x256xf32> to vector<4x256xf32>
    %41 = arith.mulf %39, %40 : vector<4x256xf32>
    %c32 = arith.constant 32 : index
    %c0_21 = arith.constant 0 : index
    %42 = vector.load %arg14[%c32, %c0_21] : memref<36x256xf32, #tpu.memory_space<vmem>>, vector<4x256xf32>
    tpu.vector_store %arg14[%c32, %c0_21], %41 {strides = array<i32>} : memref<36x256xf32, #tpu.memory_space<vmem>>, vector<4x256xf32>,
    %c0_22 = arith.constant 0 : index
    %c0_23 = arith.constant 0 : index
    %43 = vector.load %arg3[%c0_22, %c0_23] : memref<4x36xf32, #tpu.memory_space<vmem>>, vector<4x36xf32>
    %c0_24 = arith.constant 0 : index
    %c0_25 = arith.constant 0 : index
    %44 = vector.load %arg14[%c0_24, %c0_25] : memref<36x256xf32, #tpu.memory_space<vmem>>, vector<36x256xf32>
    %cst = arith.constant dense<0.000000e+00> : vector<4x256xf32>
    %45 = tpu.matmul %43, %44, %cst {dimension_numbers = #tpu.dot_dimension_numbers<[1], [0], [0], [1], [0, 0, 1, 1], [], []>} : vector<4x36xf32>, vector<36x256xf32>, vector<4x256xf32> -> vector<4x256xf32>
    %c0_26 = arith.constant 0 : index
    %c0_27 = arith.constant 0 : index
    %46 = vector.load %arg4[%c0_26, %c0_27] : memref<4x1xf32, #tpu.memory_space<vmem>>, vector<4x1xf32>
    %47 = vector.broadcast %46 : vector<4x1xf32> to vector<4x256xf32>
    %48 = arith.addf %45, %47 : vector<4x256xf32>
    %cst_28 = arith.constant dense<0.000000e+00> : vector<4xf32>
    %49 = vector.multi_reduction <add>, %48, %cst_28 [1] : vector<4x256xf32> to vector<4xf32>
    %50 = vector.shape_cast %49 : vector<4xf32> to vector<4x1xf32>
    %cst_29 = arith.constant 3.906250e-03 : f32
    %51 = vector.broadcast %cst_29 : f32 to vector<4x1xf32>
    %52 = arith.mulf %50, %51 : vector<4x1xf32>
    %cst_30 = arith.constant dense<0xFF800000> : vector<4xf32>
    %53 = vector.multi_reduction <maximumf>, %48, %cst_30 [1] : vector<4x256xf32> to vector<4xf32>
    %54 = vector.shape_cast %53 : vector<4xf32> to vector<4x1xf32>
    %55 = tpu.iota {dimensions = array<i32: 1>} : vector<4x2xi32>
    %c0_i32 = arith.constant 0 : i32
    %56 = vector.broadcast %c0_i32 : i32 to vector<4x2xi32>
    %57 = arith.cmpi eq, %55, %56 : vector<4x2xi32>
    %58 = vector.shape_cast %52 : vector<4x1xf32> to vector<4x1xf32>
    %59 = vector.broadcast %58 : vector<4x1xf32> to vector<4x2xf32>
    %60 = vector.shape_cast %54 : vector<4x1xf32> to vector<4x1xf32>
    %61 = vector.broadcast %60 : vector<4x1xf32> to vector<4x2xf32>
    %62 = arith.select %57, %59, %61 : vector<4x2xi1>, vector<4x2xf32>
    %c0_31 = arith.constant 0 : index
    %c0_32 = arith.constant 0 : index
    %63 = vector.load %arg5[%c0_31, %c0_32] : memref<4x4xf32, #tpu.memory_space<vmem>>, vector<4x4xf32>
    %cst_33 = arith.constant dense<0.000000e+00> : vector<4x2xf32>
    %64 = tpu.matmul %63, %62, %cst_33 {dimension_numbers = #tpu.dot_dimension_numbers<[1], [0], [0], [1], [0, 0, 1, 1], [], []>} : vector<4x4xf32>, vector<4x2xf32>, vector<4x2xf32> -> vector<4x2xf32>
    %c0_34 = arith.constant 0 : index
    %c0_35 = arith.constant 0 : index
    %65 = vector.load %arg6[%c0_34, %c0_35] : memref<4x1xf32, #tpu.memory_space<vmem>>, vector<4x1xf32>
    %66 = vector.broadcast %65 : vector<4x1xf32> to vector<4x2xf32>
    %67 = arith.addf %64, %66 : vector<4x2xf32>
    %cst_36 = arith.constant 0.000000e+00 : f32
    %68 = vector.broadcast %cst_36 : f32 to vector<4x2xf32>
    %69 = arith.maximumf %67, %68 : vector<4x2xf32>
    %c0_37 = arith.constant 0 : index
    %c0_38 = arith.constant 0 : index
    %70 = vector.load %arg7[%c0_37, %c0_38] : memref<4x4xf32, #tpu.memory_space<vmem>>, vector<4x4xf32>
    %cst_39 = arith.constant dense<0.000000e+00> : vector<4x2xf32>
    %71 = tpu.matmul %70, %69, %cst_39 {dimension_numbers = #tpu.dot_dimension_numbers<[1], [0], [0], [1], [0, 0, 1, 1], [], []>} : vector<4x4xf32>, vector<4x2xf32>, vector<4x2xf32> -> vector<4x2xf32>
    %c0_40 = arith.constant 0 : index
    %c0_41 = arith.constant 0 : index
    %72 = vector.load %arg8[%c0_40, %c0_41] : memref<4x1xf32, #tpu.memory_space<vmem>>, vector<4x1xf32>
    %73 = vector.broadcast %72 : vector<4x1xf32> to vector<4x2xf32>
    %74 = arith.addf %71, %73 : vector<4x2xf32>
    %75 = vector.extract_strided_slice %74 {offsets = [0, 0], sizes = [4, 1], strides = [1, 1]} : vector<4x2xf32> to vector<4x1xf32>
    %76 = vector.extract_strided_slice %74 {offsets = [0, 1], sizes = [4, 1], strides = [1, 1]} : vector<4x2xf32> to vector<4x1xf32>
    %77 = arith.addf %75, %76 : vector<4x1xf32>
    %cst_42 = arith.constant 0.000000e+00 : f32
    %78 = vector.broadcast %cst_42 : f32 to vector<4x1xf32>
    %79 = arith.subf %78, %77 : vector<4x1xf32>
    %80 = math.exp %79 : vector<4x1xf32>
    %cst_43 = arith.constant 1.000000e+00 : f32
    %81 = vector.broadcast %cst_43 : f32 to vector<4x1xf32>
    %82 = arith.addf %81, %80 : vector<4x1xf32>
    %83 = tpu.reciprocal %82 {approx = true} : vector<4x1xf32> -> vector<4x1xf32>
    %84 = vector.broadcast %83 : vector<4x1xf32> to vector<4x256xf32>
    %85 = arith.mulf %48, %84 : vector<4x256xf32>
    %cst_44 = arith.constant dense<0.000000e+00> : vector<256xf32>
    %86 = vector.multi_reduction <add>, %85, %cst_44 [0] : vector<4x256xf32> to vector<256xf32>
    %87 = vector.shape_cast %86 : vector<256xf32> to vector<1x256xf32>
    %cst_45 = arith.constant 2.500000e-01 : f32
    %88 = vector.broadcast %cst_45 : f32 to vector<1x256xf32>
    %89 = arith.mulf %87, %88 : vector<1x256xf32>
    %cst_46 = arith.constant dense<0xFF800000> : vector<256xf32>
    %90 = vector.multi_reduction <maximumf>, %85, %cst_46 [0] : vector<4x256xf32> to vector<256xf32>
    %91 = vector.shape_cast %90 : vector<256xf32> to vector<1x256xf32>
    %c0_47 = arith.constant 0 : index
    %c0_48 = arith.constant 0 : index
    %92 = vector.load %arg10[%c0_47, %c0_48] : memref<16x1xf32, #tpu.memory_space<vmem>>, vector<16x1xf32>
    %c0_49 = arith.constant 0 : index
    %c0_50 = arith.constant 0 : index
    %93 = vector.load %arg1[%c0_49, %c0_50] : memref<9x256xf32, #tpu.memory_space<vmem>>, vector<1x256xf32>
    %c17_i32_51 = arith.constant 17 : i32
    %94 = tpu.dynamic_rotate %89 by %c17_i32_51 dim 1 : vector<1x256xf32>, i32 -> vector<1x256xf32>
    %95 = arith.mulf %94, %93 : vector<1x256xf32>
    %c17_i32_52 = arith.constant 17 : i32
    %96 = tpu.dynamic_rotate %91 by %c17_i32_52 dim 1 : vector<1x256xf32>, i32 -> vector<1x256xf32>
    %97 = arith.mulf %96, %93 : vector<1x256xf32>
    %c0_53 = arith.constant 0 : index
    %c0_54 = arith.constant 0 : index
    %98 = vector.load %arg9[%c0_53, %c0_54] : memref<16x18xf32, #tpu.memory_space<vmem>>, vector<16x1xf32>
    %99 = vector.broadcast %98 : vector<16x1xf32> to vector<16x256xf32>
    %100 = vector.broadcast %95 : vector<1x256xf32> to vector<16x256xf32>
    %101 = arith.mulf %99, %100 : vector<16x256xf32>
    %102 = vector.broadcast %92 : vector<16x1xf32> to vector<16x256xf32>
    %103 = arith.addf %102, %101 : vector<16x256xf32>
    %c0_55 = arith.constant 0 : index
    %c1_56 = arith.constant 1 : index
    %104 = vector.load %arg9[%c0_55, %c1_56] : memref<16x18xf32, #tpu.memory_space<vmem>>, vector<16x1xf32>
    %105 = vector.broadcast %104 : vector<16x1xf32> to vector<16x256xf32>
    %106 = vector.broadcast %97 : vector<1x256xf32> to vector<16x256xf32>
    %107 = arith.mulf %105, %106 : vector<16x256xf32>
    %108 = arith.addf %103, %107 : vector<16x256xf32>
    %c1_57 = arith.constant 1 : index
    %c0_58 = arith.constant 0 : index
    %109 = vector.load %arg1[%c1_57, %c0_58] : memref<9x256xf32, #tpu.memory_space<vmem>>, vector<1x256xf32>
    %c16_i32_59 = arith.constant 16 : i32
    %110 = tpu.dynamic_rotate %89 by %c16_i32_59 dim 1 : vector<1x256xf32>, i32 -> vector<1x256xf32>
    %111 = arith.mulf %110, %109 : vector<1x256xf32>
    %c16_i32_60 = arith.constant 16 : i32
    %112 = tpu.dynamic_rotate %91 by %c16_i32_60 dim 1 : vector<1x256xf32>, i32 -> vector<1x256xf32>
    %113 = arith.mulf %112, %109 : vector<1x256xf32>
    %c0_61 = arith.constant 0 : index
    %c2_62 = arith.constant 2 : index
    %114 = vector.load %arg9[%c0_61, %c2_62] : memref<16x18xf32, #tpu.memory_space<vmem>>, vector<16x1xf32>
    %115 = vector.broadcast %114 : vector<16x1xf32> to vector<16x256xf32>
    %116 = vector.broadcast %111 : vector<1x256xf32> to vector<16x256xf32>
    %117 = arith.mulf %115, %116 : vector<16x256xf32>
    %118 = arith.addf %108, %117 : vector<16x256xf32>
    %c0_63 = arith.constant 0 : index
    %c3_64 = arith.constant 3 : index
    %119 = vector.load %arg9[%c0_63, %c3_64] : memref<16x18xf32, #tpu.memory_space<vmem>>, vector<16x1xf32>
    %120 = vector.broadcast %119 : vector<16x1xf32> to vector<16x256xf32>
    %121 = vector.broadcast %113 : vector<1x256xf32> to vector<16x256xf32>
    %122 = arith.mulf %120, %121 : vector<16x256xf32>
    %123 = arith.addf %118, %122 : vector<16x256xf32>
    %c2_65 = arith.constant 2 : index
    %c0_66 = arith.constant 0 : index
    %124 = vector.load %arg1[%c2_65, %c0_66] : memref<9x256xf32, #tpu.memory_space<vmem>>, vector<1x256xf32>
    %c15_i32_67 = arith.constant 15 : i32
    %125 = tpu.dynamic_rotate %89 by %c15_i32_67 dim 1 : vector<1x256xf32>, i32 -> vector<1x256xf32>
    %126 = arith.mulf %125, %124 : vector<1x256xf32>
    %c15_i32_68 = arith.constant 15 : i32
    %127 = tpu.dynamic_rotate %91 by %c15_i32_68 dim 1 : vector<1x256xf32>, i32 -> vector<1x256xf32>
    %128 = arith.mulf %127, %124 : vector<1x256xf32>
    %c0_69 = arith.constant 0 : index
    %c4_70 = arith.constant 4 : index
    %129 = vector.load %arg9[%c0_69, %c4_70] : memref<16x18xf32, #tpu.memory_space<vmem>>, vector<16x1xf32>
    %130 = vector.broadcast %129 : vector<16x1xf32> to vector<16x256xf32>
    %131 = vector.broadcast %126 : vector<1x256xf32> to vector<16x256xf32>
    %132 = arith.mulf %130, %131 : vector<16x256xf32>
    %133 = arith.addf %123, %132 : vector<16x256xf32>
    %c0_71 = arith.constant 0 : index
    %c5_72 = arith.constant 5 : index
    %134 = vector.load %arg9[%c0_71, %c5_72] : memref<16x18xf32, #tpu.memory_space<vmem>>, vector<16x1xf32>
    %135 = vector.broadcast %134 : vector<16x1xf32> to vector<16x256xf32>
    %136 = vector.broadcast %128 : vector<1x256xf32> to vector<16x256xf32>
    %137 = arith.mulf %135, %136 : vector<16x256xf32>
    %138 = arith.addf %133, %137 : vector<16x256xf32>
    %c3_73 = arith.constant 3 : index
    %c0_74 = arith.constant 0 : index
    %139 = vector.load %arg1[%c3_73, %c0_74] : memref<9x256xf32, #tpu.memory_space<vmem>>, vector<1x256xf32>
    %c1_i32_75 = arith.constant 1 : i32
    %140 = tpu.dynamic_rotate %89 by %c1_i32_75 dim 1 : vector<1x256xf32>, i32 -> vector<1x256xf32>
    %141 = arith.mulf %140, %139 : vector<1x256xf32>
    %c1_i32_76 = arith.constant 1 : i32
    %142 = tpu.dynamic_rotate %91 by %c1_i32_76 dim 1 : vector<1x256xf32>, i32 -> vector<1x256xf32>
    %143 = arith.mulf %142, %139 : vector<1x256xf32>
    %c0_77 = arith.constant 0 : index
    %c6_78 = arith.constant 6 : index
    %144 = vector.load %arg9[%c0_77, %c6_78] : memref<16x18xf32, #tpu.memory_space<vmem>>, vector<16x1xf32>
    %145 = vector.broadcast %144 : vector<16x1xf32> to vector<16x256xf32>
    %146 = vector.broadcast %141 : vector<1x256xf32> to vector<16x256xf32>
    %147 = arith.mulf %145, %146 : vector<16x256xf32>
    %148 = arith.addf %138, %147 : vector<16x256xf32>
    %c0_79 = arith.constant 0 : index
    %c7_80 = arith.constant 7 : index
    %149 = vector.load %arg9[%c0_79, %c7_80] : memref<16x18xf32, #tpu.memory_space<vmem>>, vector<16x1xf32>
    %150 = vector.broadcast %149 : vector<16x1xf32> to vector<16x256xf32>
    %151 = vector.broadcast %143 : vector<1x256xf32> to vector<16x256xf32>
    %152 = arith.mulf %150, %151 : vector<16x256xf32>
    %153 = arith.addf %148, %152 : vector<16x256xf32>
    %c0_81 = arith.constant 0 : index
    %c8_82 = arith.constant 8 : index
    %154 = vector.load %arg9[%c0_81, %c8_82] : memref<16x18xf32, #tpu.memory_space<vmem>>, vector<16x1xf32>
    %155 = vector.broadcast %154 : vector<16x1xf32> to vector<16x256xf32>
    %156 = vector.broadcast %89 : vector<1x256xf32> to vector<16x256xf32>
    %157 = arith.mulf %155, %156 : vector<16x256xf32>
    %158 = arith.addf %153, %157 : vector<16x256xf32>
    %c0_83 = arith.constant 0 : index
    %c9 = arith.constant 9 : index
    %159 = vector.load %arg9[%c0_83, %c9] : memref<16x18xf32, #tpu.memory_space<vmem>>, vector<16x1xf32>
    %160 = vector.broadcast %159 : vector<16x1xf32> to vector<16x256xf32>
    %161 = vector.broadcast %91 : vector<1x256xf32> to vector<16x256xf32>
    %162 = arith.mulf %160, %161 : vector<16x256xf32>
    %163 = arith.addf %158, %162 : vector<16x256xf32>
    %c5_84 = arith.constant 5 : index
    %c0_85 = arith.constant 0 : index
    %164 = vector.load %arg1[%c5_84, %c0_85] : memref<9x256xf32, #tpu.memory_space<vmem>>, vector<1x256xf32>
    %c255_i32_86 = arith.constant 255 : i32
    %165 = tpu.dynamic_rotate %89 by %c255_i32_86 dim 1 : vector<1x256xf32>, i32 -> vector<1x256xf32>
    %166 = arith.mulf %165, %164 : vector<1x256xf32>
    %c255_i32_87 = arith.constant 255 : i32
    %167 = tpu.dynamic_rotate %91 by %c255_i32_87 dim 1 : vector<1x256xf32>, i32 -> vector<1x256xf32>
    %168 = arith.mulf %167, %164 : vector<1x256xf32>
    %c0_88 = arith.constant 0 : index
    %c10 = arith.constant 10 : index
    %169 = vector.load %arg9[%c0_88, %c10] : memref<16x18xf32, #tpu.memory_space<vmem>>, vector<16x1xf32>
    %170 = vector.broadcast %169 : vector<16x1xf32> to vector<16x256xf32>
    %171 = vector.broadcast %166 : vector<1x256xf32> to vector<16x256xf32>
    %172 = arith.mulf %170, %171 : vector<16x256xf32>
    %173 = arith.addf %163, %172 : vector<16x256xf32>
    %c0_89 = arith.constant 0 : index
    %c11 = arith.constant 11 : index
    %174 = vector.load %arg9[%c0_89, %c11] : memref<16x18xf32, #tpu.memory_space<vmem>>, vector<16x1xf32>
    %175 = vector.broadcast %174 : vector<16x1xf32> to vector<16x256xf32>
    %176 = vector.broadcast %168 : vector<1x256xf32> to vector<16x256xf32>
    %177 = arith.mulf %175, %176 : vector<16x256xf32>
    %178 = arith.addf %173, %177 : vector<16x256xf32>
    %c6_90 = arith.constant 6 : index
    %c0_91 = arith.constant 0 : index
    %179 = vector.load %arg1[%c6_90, %c0_91] : memref<9x256xf32, #tpu.memory_space<vmem>>, vector<1x256xf32>
    %c241_i32_92 = arith.constant 241 : i32
    %180 = tpu.dynamic_rotate %89 by %c241_i32_92 dim 1 : vector<1x256xf32>, i32 -> vector<1x256xf32>
    %181 = arith.mulf %180, %179 : vector<1x256xf32>
    %c241_i32_93 = arith.constant 241 : i32
    %182 = tpu.dynamic_rotate %91 by %c241_i32_93 dim 1 : vector<1x256xf32>, i32 -> vector<1x256xf32>
    %183 = arith.mulf %182, %179 : vector<1x256xf32>
    %c0_94 = arith.constant 0 : index
    %c12_95 = arith.constant 12 : index
    %184 = vector.load %arg9[%c0_94, %c12_95] : memref<16x18xf32, #tpu.memory_space<vmem>>, vector<16x1xf32>
    %185 = vector.broadcast %184 : vector<16x1xf32> to vector<16x256xf32>
    %186 = vector.broadcast %181 : vector<1x256xf32> to vector<16x256xf32>
    %187 = arith.mulf %185, %186 : vector<16x256xf32>
    %188 = arith.addf %178, %187 : vector<16x256xf32>
    %c0_96 = arith.constant 0 : index
    %c13 = arith.constant 13 : index
    %189 = vector.load %arg9[%c0_96, %c13] : memref<16x18xf32, #tpu.memory_space<vmem>>, vector<16x1xf32>
    %190 = vector.broadcast %189 : vector<16x1xf32> to vector<16x256xf32>
    %191 = vector.broadcast %183 : vector<1x256xf32> to vector<16x256xf32>
    %192 = arith.mulf %190, %191 : vector<16x256xf32>
    %193 = arith.addf %188, %192 : vector<16x256xf32>
    %c7_97 = arith.constant 7 : index
    %c0_98 = arith.constant 0 : index
    %194 = vector.load %arg1[%c7_97, %c0_98] : memref<9x256xf32, #tpu.memory_space<vmem>>, vector<1x256xf32>
    %c240_i32_99 = arith.constant 240 : i32
    %195 = tpu.dynamic_rotate %89 by %c240_i32_99 dim 1 : vector<1x256xf32>, i32 -> vector<1x256xf32>
    %196 = arith.mulf %195, %194 : vector<1x256xf32>
    %c240_i32_100 = arith.constant 240 : i32
    %197 = tpu.dynamic_rotate %91 by %c240_i32_100 dim 1 : vector<1x256xf32>, i32 -> vector<1x256xf32>
    %198 = arith.mulf %197, %194 : vector<1x256xf32>
    %c0_101 = arith.constant 0 : index
    %c14 = arith.constant 14 : index
    %199 = vector.load %arg9[%c0_101, %c14] : memref<16x18xf32, #tpu.memory_space<vmem>>, vector<16x1xf32>
    %200 = vector.broadcast %199 : vector<16x1xf32> to vector<16x256xf32>
    %201 = vector.broadcast %196 : vector<1x256xf32> to vector<16x256xf32>
    %202 = arith.mulf %200, %201 : vector<16x256xf32>
    %203 = arith.addf %193, %202 : vector<16x256xf32>
    %c0_102 = arith.constant 0 : index
    %c15 = arith.constant 15 : index
    %204 = vector.load %arg9[%c0_102, %c15] : memref<16x18xf32, #tpu.memory_space<vmem>>, vector<16x1xf32>
    %205 = vector.broadcast %204 : vector<16x1xf32> to vector<16x256xf32>
    %206 = vector.broadcast %198 : vector<1x256xf32> to vector<16x256xf32>
    %207 = arith.mulf %205, %206 : vector<16x256xf32>
    %208 = arith.addf %203, %207 : vector<16x256xf32>
    %c8_103 = arith.constant 8 : index
    %c0_104 = arith.constant 0 : index
    %209 = vector.load %arg1[%c8_103, %c0_104] : memref<9x256xf32, #tpu.memory_space<vmem>>, vector<1x256xf32>
    %c239_i32_105 = arith.constant 239 : i32
    %210 = tpu.dynamic_rotate %89 by %c239_i32_105 dim 1 : vector<1x256xf32>, i32 -> vector<1x256xf32>
    %211 = arith.mulf %210, %209 : vector<1x256xf32>
    %c239_i32_106 = arith.constant 239 : i32
    %212 = tpu.dynamic_rotate %91 by %c239_i32_106 dim 1 : vector<1x256xf32>, i32 -> vector<1x256xf32>
    %213 = arith.mulf %212, %209 : vector<1x256xf32>
    %c0_107 = arith.constant 0 : index
    %c16_108 = arith.constant 16 : index
    %214 = vector.load %arg9[%c0_107, %c16_108] : memref<16x18xf32, #tpu.memory_space<vmem>>, vector<16x1xf32>
    %215 = vector.broadcast %214 : vector<16x1xf32> to vector<16x256xf32>
    %216 = vector.broadcast %211 : vector<1x256xf32> to vector<16x256xf32>
    %217 = arith.mulf %215, %216 : vector<16x256xf32>
    %218 = arith.addf %208, %217 : vector<16x256xf32>
    %c0_109 = arith.constant 0 : index
    %c17 = arith.constant 17 : index
    %219 = vector.load %arg9[%c0_109, %c17] : memref<16x18xf32, #tpu.memory_space<vmem>>, vector<16x1xf32>
    %220 = vector.broadcast %219 : vector<16x1xf32> to vector<16x256xf32>
    %221 = vector.broadcast %213 : vector<1x256xf32> to vector<16x256xf32>
    %222 = arith.mulf %220, %221 : vector<16x256xf32>
    %223 = arith.addf %218, %222 : vector<16x256xf32>
    %cst_110 = arith.constant 0.000000e+00 : f32
    %224 = vector.broadcast %cst_110 : f32 to vector<16x256xf32>
    %225 = arith.maximumf %223, %224 : vector<16x256xf32>
    %c0_111 = arith.constant 0 : index
    %c0_112 = arith.constant 0 : index
    %226 = vector.load %arg12[%c0_111, %c0_112] : memref<1x1xf32, #tpu.memory_space<vmem>>, vector<1x1xf32>
    %c0_113 = arith.constant 0 : index
    %c0_114 = arith.constant 0 : index
    %227 = vector.load %arg11[%c0_113, %c0_114] : memref<16x9xf32, #tpu.memory_space<vmem>>, vector<16x1xf32>
    %228 = vector.broadcast %227 : vector<16x1xf32> to vector<16x256xf32>
    %229 = arith.mulf %228, %225 : vector<16x256xf32>
    %cst_115 = arith.constant dense<0.000000e+00> : vector<256xf32>
    %230 = vector.multi_reduction <add>, %229, %cst_115 [0] : vector<16x256xf32> to vector<256xf32>
    %231 = vector.shape_cast %230 : vector<256xf32> to vector<1x256xf32>
    %c0_116 = arith.constant 0 : index
    %c0_117 = arith.constant 0 : index
    %232 = vector.load %arg1[%c0_116, %c0_117] : memref<9x256xf32, #tpu.memory_space<vmem>>, vector<1x256xf32>
    %c17_i32_118 = arith.constant 17 : i32
    %233 = tpu.dynamic_rotate %231 by %c17_i32_118 dim 1 : vector<1x256xf32>, i32 -> vector<1x256xf32>
    %234 = arith.mulf %233, %232 : vector<1x256xf32>
    %235 = vector.broadcast %226 : vector<1x1xf32> to vector<1x256xf32>
    %236 = arith.addf %235, %234 : vector<1x256xf32>
    %c0_119 = arith.constant 0 : index
    %c1_120 = arith.constant 1 : index
    %237 = vector.load %arg11[%c0_119, %c1_120] : memref<16x9xf32, #tpu.memory_space<vmem>>, vector<16x1xf32>
    %238 = vector.broadcast %237 : vector<16x1xf32> to vector<16x256xf32>
    %239 = arith.mulf %238, %225 : vector<16x256xf32>
    %cst_121 = arith.constant dense<0.000000e+00> : vector<256xf32>
    %240 = vector.multi_reduction <add>, %239, %cst_121 [0] : vector<16x256xf32> to vector<256xf32>
    %241 = vector.shape_cast %240 : vector<256xf32> to vector<1x256xf32>
    %c1_122 = arith.constant 1 : index
    %c0_123 = arith.constant 0 : index
    %242 = vector.load %arg1[%c1_122, %c0_123] : memref<9x256xf32, #tpu.memory_space<vmem>>, vector<1x256xf32>
    %c16_i32_124 = arith.constant 16 : i32
    %243 = tpu.dynamic_rotate %241 by %c16_i32_124 dim 1 : vector<1x256xf32>, i32 -> vector<1x256xf32>
    %244 = arith.mulf %243, %242 : vector<1x256xf32>
    %245 = arith.addf %236, %244 : vector<1x256xf32>
    %c0_125 = arith.constant 0 : index
    %c2_126 = arith.constant 2 : index
    %246 = vector.load %arg11[%c0_125, %c2_126] : memref<16x9xf32, #tpu.memory_space<vmem>>, vector<16x1xf32>
    %247 = vector.broadcast %246 : vector<16x1xf32> to vector<16x256xf32>
    %248 = arith.mulf %247, %225 : vector<16x256xf32>
    %cst_127 = arith.constant dense<0.000000e+00> : vector<256xf32>
    %249 = vector.multi_reduction <add>, %248, %cst_127 [0] : vector<16x256xf32> to vector<256xf32>
    %250 = vector.shape_cast %249 : vector<256xf32> to vector<1x256xf32>
    %c2_128 = arith.constant 2 : index
    %c0_129 = arith.constant 0 : index
    %251 = vector.load %arg1[%c2_128, %c0_129] : memref<9x256xf32, #tpu.memory_space<vmem>>, vector<1x256xf32>
    %c15_i32_130 = arith.constant 15 : i32
    %252 = tpu.dynamic_rotate %250 by %c15_i32_130 dim 1 : vector<1x256xf32>, i32 -> vector<1x256xf32>
    %253 = arith.mulf %252, %251 : vector<1x256xf32>
    %254 = arith.addf %245, %253 : vector<1x256xf32>
    %c0_131 = arith.constant 0 : index
    %c3_132 = arith.constant 3 : index
    %255 = vector.load %arg11[%c0_131, %c3_132] : memref<16x9xf32, #tpu.memory_space<vmem>>, vector<16x1xf32>
    %256 = vector.broadcast %255 : vector<16x1xf32> to vector<16x256xf32>
    %257 = arith.mulf %256, %225 : vector<16x256xf32>
    %cst_133 = arith.constant dense<0.000000e+00> : vector<256xf32>
    %258 = vector.multi_reduction <add>, %257, %cst_133 [0] : vector<16x256xf32> to vector<256xf32>
    %259 = vector.shape_cast %258 : vector<256xf32> to vector<1x256xf32>
    %c3_134 = arith.constant 3 : index
    %c0_135 = arith.constant 0 : index
    %260 = vector.load %arg1[%c3_134, %c0_135] : memref<9x256xf32, #tpu.memory_space<vmem>>, vector<1x256xf32>
    %c1_i32_136 = arith.constant 1 : i32
    %261 = tpu.dynamic_rotate %259 by %c1_i32_136 dim 1 : vector<1x256xf32>, i32 -> vector<1x256xf32>
    %262 = arith.mulf %261, %260 : vector<1x256xf32>
    %263 = arith.addf %254, %262 : vector<1x256xf32>
    %c0_137 = arith.constant 0 : index
    %c4_138 = arith.constant 4 : index
    %264 = vector.load %arg11[%c0_137, %c4_138] : memref<16x9xf32, #tpu.memory_space<vmem>>, vector<16x1xf32>
    %265 = vector.broadcast %264 : vector<16x1xf32> to vector<16x256xf32>
    %266 = arith.mulf %265, %225 : vector<16x256xf32>
    %cst_139 = arith.constant dense<0.000000e+00> : vector<256xf32>
    %267 = vector.multi_reduction <add>, %266, %cst_139 [0] : vector<16x256xf32> to vector<256xf32>
    %268 = vector.shape_cast %267 : vector<256xf32> to vector<1x256xf32>
    %269 = arith.addf %263, %268 : vector<1x256xf32>
    %c0_140 = arith.constant 0 : index
    %c5_141 = arith.constant 5 : index
    %270 = vector.load %arg11[%c0_140, %c5_141] : memref<16x9xf32, #tpu.memory_space<vmem>>, vector<16x1xf32>
    %271 = vector.broadcast %270 : vector<16x1xf32> to vector<16x256xf32>
    %272 = arith.mulf %271, %225 : vector<16x256xf32>
    %cst_142 = arith.constant dense<0.000000e+00> : vector<256xf32>
    %273 = vector.multi_reduction <add>, %272, %cst_142 [0] : vector<16x256xf32> to vector<256xf32>
    %274 = vector.shape_cast %273 : vector<256xf32> to vector<1x256xf32>
    %c5_143 = arith.constant 5 : index
    %c0_144 = arith.constant 0 : index
    %275 = vector.load %arg1[%c5_143, %c0_144] : memref<9x256xf32, #tpu.memory_space<vmem>>, vector<1x256xf32>
    %c255_i32_145 = arith.constant 255 : i32
    %276 = tpu.dynamic_rotate %274 by %c255_i32_145 dim 1 : vector<1x256xf32>, i32 -> vector<1x256xf32>
    %277 = arith.mulf %276, %275 : vector<1x256xf32>
    %278 = arith.addf %269, %277 : vector<1x256xf32>
    %c0_146 = arith.constant 0 : index
    %c6_147 = arith.constant 6 : index
    %279 = vector.load %arg11[%c0_146, %c6_147] : memref<16x9xf32, #tpu.memory_space<vmem>>, vector<16x1xf32>
    %280 = vector.broadcast %279 : vector<16x1xf32> to vector<16x256xf32>
    %281 = arith.mulf %280, %225 : vector<16x256xf32>
    %cst_148 = arith.constant dense<0.000000e+00> : vector<256xf32>
    %282 = vector.multi_reduction <add>, %281, %cst_148 [0] : vector<16x256xf32> to vector<256xf32>
    %283 = vector.shape_cast %282 : vector<256xf32> to vector<1x256xf32>
    %c6_149 = arith.constant 6 : index
    %c0_150 = arith.constant 0 : index
    %284 = vector.load %arg1[%c6_149, %c0_150] : memref<9x256xf32, #tpu.memory_space<vmem>>, vector<1x256xf32>
    %c241_i32_151 = arith.constant 241 : i32
    %285 = tpu.dynamic_rotate %283 by %c241_i32_151 dim 1 : vector<1x256xf32>, i32 -> vector<1x256xf32>
    %286 = arith.mulf %285, %284 : vector<1x256xf32>
    %287 = arith.addf %278, %286 : vector<1x256xf32>
    %c0_152 = arith.constant 0 : index
    %c7_153 = arith.constant 7 : index
    %288 = vector.load %arg11[%c0_152, %c7_153] : memref<16x9xf32, #tpu.memory_space<vmem>>, vector<16x1xf32>
    %289 = vector.broadcast %288 : vector<16x1xf32> to vector<16x256xf32>
    %290 = arith.mulf %289, %225 : vector<16x256xf32>
    %cst_154 = arith.constant dense<0.000000e+00> : vector<256xf32>
    %291 = vector.multi_reduction <add>, %290, %cst_154 [0] : vector<16x256xf32> to vector<256xf32>
    %292 = vector.shape_cast %291 : vector<256xf32> to vector<1x256xf32>
    %c7_155 = arith.constant 7 : index
    %c0_156 = arith.constant 0 : index
    %293 = vector.load %arg1[%c7_155, %c0_156] : memref<9x256xf32, #tpu.memory_space<vmem>>, vector<1x256xf32>
    %c240_i32_157 = arith.constant 240 : i32
    %294 = tpu.dynamic_rotate %292 by %c240_i32_157 dim 1 : vector<1x256xf32>, i32 -> vector<1x256xf32>
    %295 = arith.mulf %294, %293 : vector<1x256xf32>
    %296 = arith.addf %287, %295 : vector<1x256xf32>
    %c0_158 = arith.constant 0 : index
    %c8_159 = arith.constant 8 : index
    %297 = vector.load %arg11[%c0_158, %c8_159] : memref<16x9xf32, #tpu.memory_space<vmem>>, vector<16x1xf32>
    %298 = vector.broadcast %297 : vector<16x1xf32> to vector<16x256xf32>
    %299 = arith.mulf %298, %225 : vector<16x256xf32>
    %cst_160 = arith.constant dense<0.000000e+00> : vector<256xf32>
    %300 = vector.multi_reduction <add>, %299, %cst_160 [0] : vector<16x256xf32> to vector<256xf32>
    %301 = vector.shape_cast %300 : vector<256xf32> to vector<1x256xf32>
    %c8_161 = arith.constant 8 : index
    %c0_162 = arith.constant 0 : index
    %302 = vector.load %arg1[%c8_161, %c0_162] : memref<9x256xf32, #tpu.memory_space<vmem>>, vector<1x256xf32>
    %c239_i32_163 = arith.constant 239 : i32
    %303 = tpu.dynamic_rotate %301 by %c239_i32_163 dim 1 : vector<1x256xf32>, i32 -> vector<1x256xf32>
    %304 = arith.mulf %303, %302 : vector<1x256xf32>
    %305 = arith.addf %296, %304 : vector<1x256xf32>
    %cst_164 = arith.constant 0.000000e+00 : f32
    %306 = vector.broadcast %cst_164 : f32 to vector<1x256xf32>
    %307 = arith.subf %306, %305 : vector<1x256xf32>
    %308 = math.exp %307 : vector<1x256xf32>
    %cst_165 = arith.constant 1.000000e+00 : f32
    %309 = vector.broadcast %cst_165 : f32 to vector<1x256xf32>
    %310 = arith.addf %309, %308 : vector<1x256xf32>
    %311 = tpu.reciprocal %310 {approx = true} : vector<1x256xf32> -> vector<1x256xf32>
    %312 = vector.broadcast %311 : vector<1x256xf32> to vector<4x256xf32>
    %313 = arith.mulf %85, %312 : vector<4x256xf32>
    %c0_166 = arith.constant 0 : index
    %c0_167 = arith.constant 0 : index
    %c0_168 = arith.constant 0 : index
    %314 = vector.load %arg13[%c0_166, %c0_167, %c0_168] : memref<1x4x256xf32, #tpu.memory_space<vmem>>, vector<1x4x256xf32>
    %315 = vector.shape_cast %314 : vector<1x4x256xf32> to vector<4x256xf32>
    %316 = vector.shape_cast %313 : vector<4x256xf32> to vector<1x4x256xf32>
    tpu.vector_store %arg13[%c0_166, %c0_167, %c0_168], %316 {strides = array<i32>} : memref<1x4x256xf32, #tpu.memory_space<vmem>>, vector<1x4x256xf32>,
    return
  }
  func.func @transform_0(%arg0: i32) -> (i32, i32) {
    %c0_i32 = arith.constant 0 : i32
    %c0_i32_0 = arith.constant 0 : i32
    %c0_i32_1 = arith.constant 0 : i32
    return %c0_i32, %c0_i32_0 : i32, i32
  }
  func.func @transform_1(%arg0: i32) -> (i32, i32, i32) {
    %c0_i32 = arith.constant 0 : i32
    %c0_i32_0 = arith.constant 0 : i32
    %c0_i32_1 = arith.constant 0 : i32
    return %arg0, %c0_i32, %c0_i32_0 : i32, i32, i32
  }
  func.func @transform_2(%arg0: i32) -> (i32, i32) {
    %c0_i32 = arith.constant 0 : i32
    %c0_i32_0 = arith.constant 0 : i32
    %c0_i32_1 = arith.constant 0 : i32
    return %c0_i32, %c0_i32_0 : i32, i32
  }
  func.func @transform_3(%arg0: i32) -> (i32, i32) {
    %c0_i32 = arith.constant 0 : i32
    %c0_i32_0 = arith.constant 0 : i32
    %c0_i32_1 = arith.constant 0 : i32
    return %c0_i32, %c0_i32_0 : i32, i32
  }
  func.func @transform_4(%arg0: i32) -> (i32, i32) {
    %c0_i32 = arith.constant 0 : i32
    %c0_i32_0 = arith.constant 0 : i32
    %c0_i32_1 = arith.constant 0 : i32
    return %c0_i32, %c0_i32_0 : i32, i32
  }
  func.func @transform_5(%arg0: i32) -> (i32, i32) {
    %c0_i32 = arith.constant 0 : i32
    %c0_i32_0 = arith.constant 0 : i32
    %c0_i32_1 = arith.constant 0 : i32
    return %c0_i32, %c0_i32_0 : i32, i32
  }
  func.func @transform_6(%arg0: i32) -> (i32, i32) {
    %c0_i32 = arith.constant 0 : i32
    %c0_i32_0 = arith.constant 0 : i32
    %c0_i32_1 = arith.constant 0 : i32
    return %c0_i32, %c0_i32_0 : i32, i32
  }
  func.func @transform_7(%arg0: i32) -> (i32, i32) {
    %c0_i32 = arith.constant 0 : i32
    %c0_i32_0 = arith.constant 0 : i32
    %c0_i32_1 = arith.constant 0 : i32
    return %c0_i32, %c0_i32_0 : i32, i32
  }
  func.func @transform_8(%arg0: i32) -> (i32, i32) {
    %c0_i32 = arith.constant 0 : i32
    %c0_i32_0 = arith.constant 0 : i32
    %c0_i32_1 = arith.constant 0 : i32
    return %c0_i32, %c0_i32_0 : i32, i32
  }
  func.func @transform_9(%arg0: i32) -> (i32, i32) {
    %c0_i32 = arith.constant 0 : i32
    %c0_i32_0 = arith.constant 0 : i32
    %c0_i32_1 = arith.constant 0 : i32
    return %c0_i32, %c0_i32_0 : i32, i32
  }
  func.func @transform_10(%arg0: i32) -> (i32, i32) {
    %c0_i32 = arith.constant 0 : i32
    %c0_i32_0 = arith.constant 0 : i32
    %c0_i32_1 = arith.constant 0 : i32
    return %c0_i32, %c0_i32_0 : i32, i32
  }
  func.func @transform_11(%arg0: i32) -> (i32, i32) {
    %c0_i32 = arith.constant 0 : i32
    %c0_i32_0 = arith.constant 0 : i32
    %c0_i32_1 = arith.constant 0 : i32
    return %c0_i32, %c0_i32_0 : i32, i32
  }
  func.func @transform_12(%arg0: i32) -> (i32, i32, i32) {
    %c0_i32 = arith.constant 0 : i32
    %c0_i32_0 = arith.constant 0 : i32
    %c0_i32_1 = arith.constant 0 : i32
    return %arg0, %c0_i32, %c0_i32_0 : i32, i32, i32
  }
}

</mosaic_0001>

<llo_original>
// kernel: tpu_custom_call.1
$region0: #{tpu_custom_call.1}
  #allocation0 [shape = 'u32[]', space=smem, size = 0x4, offset = 0x4, fixed_abs, tag = 'smem constant byte address 0x4 - core index']
  #allocation1 [shape = 'u32[144,128]{1,0:T(1,128)}', space=vmem, size = 0x12000, scoped, tag = 'internal scratch']
  #allocation2 [shape = 'f32[36,256]{1,0:T(8,128)}', space=vmem, size = 0xa000, scoped, tag = 'scratch operand']
  #allocation3 [shape = 'f32[1,1]{1,0:T(1,128)S(1)}', space=vmem, size = 0x200, scoped, tag = 'scoped memory for tpu_custom_call.1']
  %s0 = inlined_call_operand.vmem [shape: f32[9,256], index: 0, kind: input, shape index: {}]
  %s1 = inlined_call_operand.hbm [shape: f32[2,4,256], index: 1, kind: input, shape index: {}]
  %s2 = inlined_call_operand.hbm [shape: f32[4,36], index: 2, kind: input, shape index: {}]
  %s3 = inlined_call_operand.vmem [shape: f32[4,1], index: 3, kind: input, shape index: {}]
  %s4 = inlined_call_operand.hbm [shape: f32[4,4], index: 4, kind: input, shape index: {}]
  %s5 = inlined_call_operand.vmem [shape: f32[4,1], index: 5, kind: input, shape index: {}]
  %s6 = inlined_call_operand.hbm [shape: f32[4,4], index: 6, kind: input, shape index: {}]
  %s7 = inlined_call_operand.vmem [shape: f32[4,1], index: 7, kind: input, shape index: {}]
  %s8 = inlined_call_operand.vmem [shape: f32[16,18], index: 8, kind: input, shape index: {}]
  %s9 = inlined_call_operand.vmem [shape: f32[16,1], index: 9, kind: input, shape index: {}]
  %s10 = inlined_call_operand.vmem [shape: f32[16,9], index: 10, kind: input, shape index: {}]
  %s11 = inlined_call_operand.<no memory space> [shape: f32[1,1], index: 11, kind: input, shape index: {}]
  %s12 = inlined_call_operand.hbm [shape: f32[2,4,256], index: 12, kind: output, shape index: {}]
  %s13 = sld [smem:[#allocation0]]
  $region97: #{tpu_custom_call.1} parent=0
    _
  %s15 = ssub.s32 1, %s13
  %s16 = scalar_select 0, %s15, %s13
  %v17 = vstv %s11
  %18 = vst [vmem:[#allocation3] sm:$0x1] %v17
  $region1: #{tpu_custom_call.1} parent=0
    #allocation4 [shape = 'u8[8192]{0}', space=vmem, size = 0x2000, scoped, tag = 'input window, operand 1']
    #allocation5 [shape = 's32[2]{0}', space=sflag, size = 0x8, scoped, tag = 'scoped memory for tpu_custom_call.1']
    #allocation6 [shape = 's32[2]{0}', space=sflag, size = 0x8, scoped, tag = 'scoped memory for tpu_custom_call.1']
    #allocation7 [shape = 'u8[2048]{0}', space=vmem, size = 0x800, scoped, tag = 'input window, operand 2, single buffered']
    #allocation8 [shape = 's32[1]{0}', space=sflag, size = 0x4, scoped, tag = 'scoped memory for tpu_custom_call.1']
    #allocation9 [shape = 'u8[2048]{0}', space=vmem, size = 0x800, scoped, tag = 'input window, operand 4, single buffered']
    #allocation10 [shape = 'u8[2048]{0}', space=vmem, size = 0x800, scoped, tag = 'input window, operand 6, single buffered']
    #allocation11 [shape = 's32[1]{0}', space=sflag, size = 0x4, scoped, tag = 'scoped memory for tpu_custom_call.1']
    #allocation12 [shape = 'u8[8192]{0}', space=vmem, size = 0x2000, scoped, tag = 'output window, operand 0']
    %19 = vsyncpa [#allocation5], 0
    %s20 = scalar_lea.sflag [#allocation5], 1
    %21 = vsyncpa %s20, 0
    %22 = vsyncpa [#allocation8], 0
    %23 = vsyncpa [#allocation11], 0
    %24 = vsyncpa [#allocation6], 0
    %s25 = scalar_lea.sflag [#allocation6], 1
    %26 = vsyncpa %s25, 0
    loop: start=0, step=1, limit=4
    $region2: #{tpu_custom_call.1} parent=1 // loop_pre_header
      _
    $region3: #{tpu_custom_call.1} parent=1 // loop_header
      %s28 = sphi 0, %s32
      %p29 = scmp.ge.s32.totalorder %s28, 4
      %s36 = sphi 0, %s36
      %s38 = sphi 0, %s36
      %s39 = sphi 0, %s38
      %s53 = sphi 0, %s39
      %s59 = sphi 0, %s61
      %s62 = sphi 0, %s59
      %s63 = sphi 0, %s62
      %s79 = sphi 0, %s63
      %s83 = sphi 0, %s83
      %s85 = sphi 0, %s83
      %s86 = sphi 0, %s85
      %s100 = sphi 0, %s86
      %s104 = sphi 0, %s104
      %s106 = sphi 0, %s104
      %s107 = sphi 0, %s106
      %s121 = sphi 0, %s107
      %s125 = sphi 0, %s125
      %s127 = sphi 0, %s125
      %s128 = sphi 0, %s127
      %s142 = sphi 0, %s128
      %s146 = sphi 0, %s146
      %s148 = sphi 0, %s146
      %s149 = sphi 0, %s148
      %s163 = sphi 0, %s149
      %s167 = sphi 0, %s167
      %s169 = sphi 0, %s167
      %s170 = sphi 0, %s169
      %s184 = sphi 0, %s170
      %s188 = sphi 0, %s188
      %s190 = sphi 0, %s188
      %s191 = sphi 0, %s190
      %s205 = sphi 0, %s191
      %s209 = sphi 0, %s209
      %s211 = sphi 0, %s209
      %s212 = sphi 0, %s211
      %s226 = sphi 0, %s212
      %s230 = sphi 0, %s230
      %s232 = sphi 0, %s230
      %s233 = sphi 0, %s232
      %s247 = sphi 0, %s233
      %s251 = sphi 0, %s251
      %s253 = sphi 0, %s251
      %s254 = sphi 0, %s253
      %s268 = sphi 0, %s254
      %s272 = sphi 0, %s272
      %s274 = sphi 0, %s272
      %s275 = sphi 0, %s274
      %s289 = sphi 0, %s275
      %s295 = sphi 0, %s297
      %s298 = sphi 0, %s295
      %s299 = sphi 0, %s298
      %s315 = sphi 0, %s299
    $region4: #{tpu_custom_call.1} parent=1 // loop_header_branch
      %31 = sbr.rel (%p29) target = $region8
    $region5: #{tpu_custom_call.1} parent=1 // loop_body
      %s33 = ssub.s32 %s28, 1
      %s34 = ssub.s32 %s28, 2
      %s35 = sadd.s32 %s28, 1
      %s37 = sadd.s32 %s36, 1
      %p40 = scmp.eq.s32.totalorder %s28, 1
      %p41 = scmp.ne.s32.totalorder %s36, %s38
      %p42 = scmp.eq.s32.totalorder %s28, 0
      %p43 = por %p41, %p42
      %p44 = scmp.ne.s32.totalorder %s36, %s38
      %p45 = scmp.eq.s32.totalorder %s33, 1
      %p46 = por %p44, %p45
      %p47 = scmp.ne.s32.totalorder %s38, %s39
      %p48 = scmp.eq.s32.totalorder %s33, 0
      %p49 = por %p47, %p48
      %p50 = scmp.ne.s32.totalorder %s38, %s39
      %p51 = scmp.eq.s32.totalorder %s34, 1
      %p52 = por %p50, %p51
      %p54 = scmp.ne.s32.totalorder %s39, %s53
      %p55 = scmp.eq.s32.totalorder %s34, 0
      %p56 = por %p54, %p55
      %s57 = ssub.s32 %s28, %s35
      %p58 = scmp.eq.s32.totalorder %s57, 0
      %s60 = sadd.s32 %s59, 1
      %s61 = scalar_select %p58, %s59, %s60
      %p64 = pneg %p58
      %p65 = scmp.eq.s32.totalorder %s28, 1
      %p66 = por %p64, %p65
      %p67 = scmp.ne.s32.totalorder %s59, %s62
      %p68 = scmp.eq.s32.totalorder %s28, 0
      %p69 = por %p67, %p68
      %p70 = scmp.ne.s32.totalorder %s59, %s62
      %p71 = scmp.eq.s32.totalorder %s33, 1
      %p72 = por %p70, %p71
      %p73 = scmp.ne.s32.totalorder %s62, %s63
      %p74 = scmp.eq.s32.totalorder %s33, 0
      %p75 = por %p73, %p74
      %p76 = scmp.ne.s32.totalorder %s62, %s63
      %p77 = scmp.eq.s32.totalorder %s34, 1
      %p78 = por %p76, %p77
      %p80 = scmp.ne.s32.totalorder %s63, %s79
      %p81 = scmp.eq.s32.totalorder %s34, 0
      %p82 = por %p80, %p81
      %s84 = sadd.s32 %s83, 1
      %p87 = scmp.eq.s32.totalorder %s28, 1
      %p88 = scmp.ne.s32.totalorder %s83, %s85
      %p89 = scmp.eq.s32.totalorder %s28, 0
      %p90 = por %p88, %p89
      %p91 = scmp.ne.s32.totalorder %s83, %s85
      %p92 = scmp.eq.s32.totalorder %s33, 1
      %p93 = por %p91, %p92
      %p94 = scmp.ne.s32.totalorder %s85, %s86
      %p95 = scmp.eq.s32.totalorder %s33, 0
      %p96 = por %p94, %p95
      %p97 = scmp.ne.s32.totalorder %s85, %s86
      %p98 = scmp.eq.s32.totalorder %s34, 1
      %p99 = por %p97, %p98
      %p101 = scmp.ne.s32.totalorder %s86, %s100
      %p102 = scmp.eq.s32.totalorder %s34, 0
      %p103 = por %p101, %p102
      %s105 = sadd.s32 %s104, 1
      %p108 = scmp.eq.s32.totalorder %s28, 1
      %p109 = scmp.ne.s32.totalorder %s104, %s106
      %p110 = scmp.eq.s32.totalorder %s28, 0
      %p111 = por %p109, %p110
      %p112 = scmp.ne.s32.totalorder %s104, %s106
      %p113 = scmp.eq.s32.totalorder %s33, 1
      %p114 = por %p112, %p113
      %p115 = scmp.ne.s32.totalorder %s106, %s107
      %p116 = scmp.eq.s32.totalorder %s33, 0
      %p117 = por %p115, %p116
      %p118 = scmp.ne.s32.totalorder %s106, %s107
      %p119 = scmp.eq.s32.totalorder %s34, 1
      %p120 = por %p118, %p119
      %p122 = scmp.ne.s32.totalorder %s107, %s121
      %p123 = scmp.eq.s32.totalorder %s34, 0
      %p124 = por %p122, %p123
      %s126 = sadd.s32 %s125, 1
      %p129 = scmp.eq.s32.totalorder %s28, 1
      %p130 = scmp.ne.s32.totalorder %s125, %s127
      %p131 = scmp.eq.s32.totalorder %s28, 0
      %p132 = por %p130, %p131
      %p133 = scmp.ne.s32.totalorder %s125, %s127
      %p134 = scmp.eq.s32.totalorder %s33, 1
      %p135 = por %p133, %p134
      %p136 = scmp.ne.s32.totalorder %s127, %s128
      %p137 = scmp.eq.s32.totalorder %s33, 0
      %p138 = por %p136, %p137
      %p139 = scmp.ne.s32.totalorder %s127, %s128
      %p140 = scmp.eq.s32.totalorder %s34, 1
      %p141 = por %p139, %p140
      %p143 = scmp.ne.s32.totalorder %s128, %s142
      %p144 = scmp.eq.s32.totalorder %s34, 0
      %p145 = por %p143, %p144
      %s147 = sadd.s32 %s146, 1
      %p150 = scmp.eq.s32.totalorder %s28, 1
      %p151 = scmp.ne.s32.totalorder %s146, %s148
      %p152 = scmp.eq.s32.totalorder %s28, 0
      %p153 = por %p151, %p152
      %p154 = scmp.ne.s32.totalorder %s146, %s148
      %p155 = scmp.eq.s32.totalorder %s33, 1
      %p156 = por %p154, %p155
      %p157 = scmp.ne.s32.totalorder %s148, %s149
      %p158 = scmp.eq.s32.totalorder %s33, 0
      %p159 = por %p157, %p158
      %p160 = scmp.ne.s32.totalorder %s148, %s149
      %p161 = scmp.eq.s32.totalorder %s34, 1
      %p162 = por %p160, %p161
      %p164 = scmp.ne.s32.totalorder %s149, %s163
      %p165 = scmp.eq.s32.totalorder %s34, 0
      %p166 = por %p164, %p165
      %s168 = sadd.s32 %s167, 1
      %p171 = scmp.eq.s32.totalorder %s28, 1
      %p172 = scmp.ne.s32.totalorder %s167, %s169
      %p173 = scmp.eq.s32.totalorder %s28, 0
      %p174 = por %p172, %p173
      %p175 = scmp.ne.s32.totalorder %s167, %s169
      %p176 = scmp.eq.s32.totalorder %s33, 1
      %p177 = por %p175, %p176
      %p178 = scmp.ne.s32.totalorder %s169, %s170
      %p179 = scmp.eq.s32.totalorder %s33, 0
      %p180 = por %p178, %p179
      %p181 = scmp.ne.s32.totalorder %s169, %s170
      %p182 = scmp.eq.s32.totalorder %s34, 1
      %p183 = por %p181, %p182
      %p185 = scmp.ne.s32.totalorder %s170, %s184
      %p186 = scmp.eq.s32.totalorder %s34, 0
      %p187 = por %p185, %p186
      %s189 = sadd.s32 %s188, 1
      %p192 = scmp.eq.s32.totalorder %s28, 1
      %p193 = scmp.ne.s32.totalorder %s188, %s190
      %p194 = scmp.eq.s32.totalorder %s28, 0
      %p195 = por %p193, %p194
      %p196 = scmp.ne.s32.totalorder %s188, %s190
      %p197 = scmp.eq.s32.totalorder %s33, 1
      %p198 = por %p196, %p197
      %p199 = scmp.ne.s32.totalorder %s190, %s191
      %p200 = scmp.eq.s32.totalorder %s33, 0
      %p201 = por %p199, %p200
      %p202 = scmp.ne.s32.totalorder %s190, %s191
      %p203 = scmp.eq.s32.totalorder %s34, 1
      %p204 = por %p202, %p203
      %p206 = scmp.ne.s32.totalorder %s191, %s205
      %p207 = scmp.eq.s32.totalorder %s34, 0
      %p208 = por %p206, %p207
      %s210 = sadd.s32 %s209, 1
      %p213 = scmp.eq.s32.totalorder %s28, 1
      %p214 = scmp.ne.s32.totalorder %s209, %s211
      %p215 = scmp.eq.s32.totalorder %s28, 0
      %p216 = por %p214, %p215
      %p217 = scmp.ne.s32.totalorder %s209, %s211
      %p218 = scmp.eq.s32.totalorder %s33, 1
      %p219 = por %p217, %p218
      %p220 = scmp.ne.s32.totalorder %s211, %s212
      %p221 = scmp.eq.s32.totalorder %s33, 0
      %p222 = por %p220, %p221
      %p223 = scmp.ne.s32.totalorder %s211, %s212
      %p224 = scmp.eq.s32.totalorder %s34, 1
      %p225 = por %p223, %p224
      %p227 = scmp.ne.s32.totalorder %s212, %s226
      %p228 = scmp.eq.s32.totalorder %s34, 0
      %p229 = por %p227, %p228
      %s231 = sadd.s32 %s230, 1
      %p234 = scmp.eq.s32.totalorder %s28, 1
      %p235 = scmp.ne.s32.totalorder %s230, %s232
      %p236 = scmp.eq.s32.totalorder %s28, 0
      %p237 = por %p235, %p236
      %p238 = scmp.ne.s32.totalorder %s230, %s232
      %p239 = scmp.eq.s32.totalorder %s33, 1
      %p240 = por %p238, %p239
      %p241 = scmp.ne.s32.totalorder %s232, %s233
      %p242 = scmp.eq.s32.totalorder %s33, 0
      %p243 = por %p241, %p242
      %p244 = scmp.ne.s32.totalorder %s232, %s233
      %p245 = scmp.eq.s32.totalorder %s34, 1
      %p246 = por %p244, %p245
      %p248 = scmp.ne.s32.totalorder %s233, %s247
      %p249 = scmp.eq.s32.totalorder %s34, 0
      %p250 = por %p248, %p249
      %s252 = sadd.s32 %s251, 1
      %p255 = scmp.eq.s32.totalorder %s28, 1
      %p256 = scmp.ne.s32.totalorder %s251, %s253
      %p257 = scmp.eq.s32.totalorder %s28, 0
      %p258 = por %p256, %p257
      %p259 = scmp.ne.s32.totalorder %s251, %s253
      %p260 = scmp.eq.s32.totalorder %s33, 1
      %p261 = por %p259, %p260
      %p262 = scmp.ne.s32.totalorder %s253, %s254
      %p263 = scmp.eq.s32.totalorder %s33, 0
      %p264 = por %p262, %p263
      %p265 = scmp.ne.s32.totalorder %s253, %s254
      %p266 = scmp.eq.s32.totalorder %s34, 1
      %p267 = por %p265, %p266
      %p269 = scmp.ne.s32.totalorder %s254, %s268
      %p270 = scmp.eq.s32.totalorder %s34, 0
      %p271 = por %p269, %p270
      %s273 = sadd.s32 %s272, 1
      %p276 = scmp.eq.s32.totalorder %s28, 1
      %p277 = scmp.ne.s32.totalorder %s272, %s274
      %p278 = scmp.eq.s32.totalorder %s28, 0
      %p279 = por %p277, %p278
      %p280 = scmp.ne.s32.totalorder %s272, %s274
      %p281 = scmp.eq.s32.totalorder %s33, 1
      %p282 = por %p280, %p281
      %p283 = scmp.ne.s32.totalorder %s274, %s275
      %p284 = scmp.eq.s32.totalorder %s33, 0
      %p285 = por %p283, %p284
      %p286 = scmp.ne.s32.totalorder %s274, %s275
      %p287 = scmp.eq.s32.totalorder %s34, 1
      %p288 = por %p286, %p287
      %p290 = scmp.ne.s32.totalorder %s275, %s289
      %p291 = scmp.eq.s32.totalorder %s34, 0
      %p292 = por %p290, %p291
      %s293 = ssub.s32 %s28, %s35
      %p294 = scmp.eq.s32.totalorder %s293, 0
      %s296 = sadd.s32 %s295, 1
      %s297 = scalar_select %p294, %s295, %s296
      %p300 = pneg %p294
      %p301 = scmp.eq.s32.totalorder %s28, 1
      %p302 = por %p300, %p301
      %p303 = scmp.ne.s32.totalorder %s295, %s298
      %p304 = scmp.eq.s32.totalorder %s28, 0
      %p305 = por %p303, %p304
      %p306 = scmp.ne.s32.totalorder %s295, %s298
      %p307 = scmp.eq.s32.totalorder %s33, 1
      %p308 = por %p306, %p307
      %p309 = scmp.ne.s32.totalorder %s298, %s299
      %p310 = scmp.eq.s32.totalorder %s33, 0
      %p311 = por %p309, %p310
      %p312 = scmp.ne.s32.totalorder %s298, %s299
      %p313 = scmp.eq.s32.totalorder %s34, 1
      %p314 = por %p312, %p313
      %p316 = scmp.ne.s32.totalorder %s299, %s315
      %p317 = scmp.eq.s32.totalorder %s34, 0
      %p318 = por %p316, %p317
      %p319 = scmp.le.s32.totalorder 1, %s28
      %p320 = scmp.lt.s32.totalorder %s28, 3
      %p321 = pnand %p319, %p320
      %p322 = pneg %p321
      // Predicated region
      $region9: #{tpu_custom_call.1} parent=5 // pred_check
        _
      $region10: #{tpu_custom_call.1} parent=5 // pred_check_branch
        %324 = sbr.rel (%p321) target = $region12
      $region11: #{tpu_custom_call.1} parent=5 // pred_region
        %s325 = ssub.s32 %s28, 1
        // Predicated region
        $region13: #{tpu_custom_call.1} parent=11 // pred_check
          %p326 = pneg %p49
        $region14: #{tpu_custom_call.1} parent=11 // pred_check_branch
          %328 = sbr.rel (%p326) target = $region16
        $region15: #{tpu_custom_call.1} parent=11 // pred_region
          _
        $region16: #{tpu_custom_call.1} parent=11 // pred_fallthru
          _
        // Predicated region
        $region17: #{tpu_custom_call.1} parent=11 // pred_check
          %p329 = pneg %p96
        $region18: #{tpu_custom_call.1} parent=11 // pred_check_branch
          %331 = sbr.rel (%p329) target = $region20
        $region19: #{tpu_custom_call.1} parent=11 // pred_region
          %s333 = ssub.s32 64, 64
          %334 = vsyncadd [#allocation8], %s333
          %s336 = sshll.u32 [#allocation7], 4
          %s337 = int_to_ptr.vmem [resolvable:$true] %s336
          %339 = dma.hbm_to_vmem [thread:$0]  %s2, 64, %s337, [#allocation8]
        $region20: #{tpu_custom_call.1} parent=11 // pred_fallthru
          _
        // Predicated region
        $region21: #{tpu_custom_call.1} parent=11 // pred_check
          %p340 = pneg %p117
        $region22: #{tpu_custom_call.1} parent=11 // pred_check_branch
          %342 = sbr.rel (%p340) target = $region24
        $region23: #{tpu_custom_call.1} parent=11 // pred_region
          _
        $region24: #{tpu_custom_call.1} parent=11 // pred_fallthru
          _
        // Predicated region
        $region25: #{tpu_custom_call.1} parent=11 // pred_check
          %p343 = pneg %p138
        $region26: #{tpu_custom_call.1} parent=11 // pred_check_branch
          %345 = sbr.rel (%p343) target = $region28
        $region27: #{tpu_custom_call.1} parent=11 // pred_region
          %s347 = ssub.s32 64, 64
          %348 = vsyncadd [#allocation8], %s347
          %s350 = sshll.u32 [#allocation9], 4
          %s351 = int_to_ptr.vmem [resolvable:$true] %s350
          %353 = dma.hbm_to_vmem [thread:$0]  %s4, 64, %s351, [#allocation8]
        $region28: #{tpu_custom_call.1} parent=11 // pred_fallthru
          _
        // Predicated region
        $region29: #{tpu_custom_call.1} parent=11 // pred_check
          %p354 = pneg %p159
        $region30: #{tpu_custom_call.1} parent=11 // pred_check_branch
          %356 = sbr.rel (%p354) target = $region32
        $region31: #{tpu_custom_call.1} parent=11 // pred_region
          _
        $region32: #{tpu_custom_call.1} parent=11 // pred_fallthru
          _
        // Predicated region
        $region33: #{tpu_custom_call.1} parent=11 // pred_check
          %p357 = pneg %p180
        $region34: #{tpu_custom_call.1} parent=11 // pred_check_branch
          %359 = sbr.rel (%p357) target = $region36
        $region35: #{tpu_custom_call.1} parent=11 // pred_region
          %s361 = ssub.s32 64, 64
          %362 = vsyncadd [#allocation11], %s361
          %s364 = sshll.u32 [#allocation10], 4
          %s365 = int_to_ptr.vmem [resolvable:$true] %s364
          %367 = dma.hbm_to_vmem [thread:$0]  %s6, 64, %s365, [#allocation11]
        $region36: #{tpu_custom_call.1} parent=11 // pred_fallthru
          _
        // Predicated region
        $region37: #{tpu_custom_call.1} parent=11 // pred_check
          %p368 = pneg %p201
        $region38: #{tpu_custom_call.1} parent=11 // pred_check_branch
          %370 = sbr.rel (%p368) target = $region40
        $region39: #{tpu_custom_call.1} parent=11 // pred_region
          _
        $region40: #{tpu_custom_call.1} parent=11 // pred_fallthru
          _
        // Predicated region
        $region41: #{tpu_custom_call.1} parent=11 // pred_check
          %p371 = pneg %p222
        $region42: #{tpu_custom_call.1} parent=11 // pred_check_branch
          %373 = sbr.rel (%p371) target = $region44
        $region43: #{tpu_custom_call.1} parent=11 // pred_region
          _
        $region44: #{tpu_custom_call.1} parent=11 // pred_fallthru
          _
        // Predicated region
        $region45: #{tpu_custom_call.1} parent=11 // pred_check
          %p374 = pneg %p243
        $region46: #{tpu_custom_call.1} parent=11 // pred_check_branch
          %376 = sbr.rel (%p374) target = $region48
        $region47: #{tpu_custom_call.1} parent=11 // pred_region
          _
        $region48: #{tpu_custom_call.1} parent=11 // pred_fallthru
          _
        // Predicated region
        $region49: #{tpu_custom_call.1} parent=11 // pred_check
          %p377 = pneg %p264
        $region50: #{tpu_custom_call.1} parent=11 // pred_check_branch
          %379 = sbr.rel (%p377) target = $region52
        $region51: #{tpu_custom_call.1} parent=11 // pred_region
          _
        $region52: #{tpu_custom_call.1} parent=11 // pred_fallthru
          _
        // Predicated region
        $region53: #{tpu_custom_call.1} parent=11 // pred_check
          %p380 = pneg %p285
        $region54: #{tpu_custom_call.1} parent=11 // pred_check_branch
          %382 = sbr.rel (%p380) target = $region56
        $region55: #{tpu_custom_call.1} parent=11 // pred_region
          _
        $region56: #{tpu_custom_call.1} parent=11 // pred_fallthru
          _
      $region12: #{tpu_custom_call.1} parent=5 // pred_fallthru
        _
      %p383 = scmp.lt.s32.totalorder %s28, 2
      // Predicated region
      $region57: #{tpu_custom_call.1} parent=5 // pred_check
        %p384 = pneg %p383
      $region58: #{tpu_custom_call.1} parent=5 // pred_check_branch
        %386 = sbr.rel (%p384) target = $region60
      $region59: #{tpu_custom_call.1} parent=5 // pred_region
        // Predicated region
        $region61: #{tpu_custom_call.1} parent=59 // pred_check
          %p387 = pneg %p69
        $region62: #{tpu_custom_call.1} parent=59 // pred_check_branch
          %389 = sbr.rel (%p387) target = $region64
        $region63: #{tpu_custom_call.1} parent=59 // pred_region
          %s390 = sand.u32 %s59, 1
          %s391 = scalar_lea.sflag [#allocation5], %s390
          %s392 = sand.u32 %s59, 1
          %s393 = smul.addr %s392, 8
          %s394 = scalar_lea.vmem [#allocation4], %s393
          %s396 = ssub.s32 128, 128
          %397 = vsyncadd %s391, %s396
          %s398 = smul.addr %s28, 2
          %s399 = smul.addr %s398, 64
          %s400 = scalar_lea.hbm %s1, %s399
          %s402 = sshll.u32 %s394, 4
          %s403 = int_to_ptr.vmem [resolvable:$true] %s402
          %405 = dma.hbm_to_vmem [thread:$0]  %s400, 128, %s403, %s391
        $region64: #{tpu_custom_call.1} parent=59 // pred_fallthru
          _
      $region60: #{tpu_custom_call.1} parent=5 // pred_fallthru
        _
      %p406 = scmp.le.s32.totalorder 1, %s28
      %p407 = scmp.lt.s32.totalorder %s28, 3
      %p408 = pnand %p406, %p407
      %p409 = pneg %p408
      // Predicated region
      $region65: #{tpu_custom_call.1} parent=5 // pred_check
        _
      $region66: #{tpu_custom_call.1} parent=5 // pred_check_branch
        %411 = sbr.rel (%p408) target = $region68
      $region67: #{tpu_custom_call.1} parent=5 // pred_region
        %s412 = ssub.s32 %s28, 1
        %s413 = sand.u32 %s62, 1
        %s414 = scalar_lea.sflag [#allocation5], %s413
        %s415 = sand.u32 %s62, 1
        %s416 = smul.addr %s415, 8
        %s417 = scalar_lea.vmem [#allocation4], %s416
        // Predicated region
        $region69: #{tpu_custom_call.1} parent=67 // pred_check
          %p418 = pneg %p75
        $region70: #{tpu_custom_call.1} parent=67 // pred_check_branch
          %420 = sbr.rel (%p418) target = $region72
        $region71: #{tpu_custom_call.1} parent=67 // pred_region
          %421 = dma.done %s414, 128
        $region72: #{tpu_custom_call.1} parent=67 // pred_fallthru
          _
        // Predicated region
        $region73: #{tpu_custom_call.1} parent=67 // pred_check
          %p422 = pneg %p96
        $region74: #{tpu_custom_call.1} parent=67 // pred_check_branch
          %424 = sbr.rel (%p422) target = $region76
        $region75: #{tpu_custom_call.1} parent=67 // pred_region
          %425 = dma.done [#allocation8], 64
        $region76: #{tpu_custom_call.1} parent=67 // pred_fallthru
          _
        // Predicated region
        $region77: #{tpu_custom_call.1} parent=67 // pred_check
          %p426 = pneg %p138
        $region78: #{tpu_custom_call.1} parent=67 // pred_check_branch
          %428 = sbr.rel (%p426) target = $region80
        $region79: #{tpu_custom_call.1} parent=67 // pred_region
          %429 = dma.done [#allocation8], 64
        $region80: #{tpu_custom_call.1} parent=67 // pred_fallthru
          _
        // Predicated region
        $region81: #{tpu_custom_call.1} parent=67 // pred_check
          %p430 = pneg %p180
        $region82: #{tpu_custom_call.1} parent=67 // pred_check_branch
          %432 = sbr.rel (%p430) target = $region84
        $region83: #{tpu_custom_call.1} parent=67 // pred_region
          %433 = dma.done [#allocation11], 64
        $region84: #{tpu_custom_call.1} parent=67 // pred_fallthru
          _
        %p434 = pneg %p49
        %p435 = pneg %p46
        %s436 = sand.u32 %s62, 1
        %s437 = scalar_lea.sflag [#allocation5], %s436
        %s438 = sand.u32 %s62, 1
        %s439 = smul.addr %s438, 8
        %s440 = scalar_lea.vmem [#allocation4], %s439
        %p441 = pneg %p75
        %p442 = pneg %p72
        %p443 = pneg %p96
        %p444 = pneg %p93
        %p445 = pneg %p117
        %p446 = pneg %p114
        %p447 = pneg %p138
        %p448 = pneg %p135
        %p449 = pneg %p159
        %p450 = pneg %p156
        %p451 = pneg %p180
        %p452 = pneg %p177
        %p453 = pneg %p201
        %p454 = pneg %p198
        %p455 = pneg %p222
        %p456 = pneg %p219
        %p457 = pneg %p243
        %p458 = pneg %p240
        %p459 = pneg %p264
        %p460 = pneg %p261
        %p461 = pneg %p285
        %p462 = pneg %p282
        %p463 = pneg %p311
        %p464 = pneg %p308
        %s465 = sand.u32 %s298, 1
        %s466 = scalar_lea.sflag [#allocation6], %s465
        %s467 = sand.u32 %s298, 1
        %s468 = smul.addr %s467, 8
        %s469 = scalar_lea.vmem [#allocation12], %s468
        %v470 = vld [vmem:[%s417] sm:$0xff]
        %v471 = vld [vmem:[%s0] ss:$8 sm:$0x3]
        %v473 = vcombine.high %v470, %v470
        %475 = vrot.lane.b32.xlu0 %v470, 17
        %v476 = vpop.permute.xlu0 %475
        %477 = vrot.lane.b32.xlu0 %v473, 17
        %v478 = vpop.permute.xlu0 %477
        %v479 = vlaneseq
        %v480 = vand.u32 %v479, 127
        %vm481 = vcmp.lt.s32.totalorder %v480, 17
        %v482 = vsel %vm481, %v476, %v478
        %v483 = vsel %vm481, %v478, %v476
        %v485 = vlaneseq
        %v486 = vshrl.u32 %v485, 7
        %v487 = vsub.s32 0, %v486
        %v488 = vrot.slane %v471, %v487
        %v489 = vlaneseq
        %v490 = vshrl.u32 %v489, 7
        %v491 = vsub.s32 1, %v490
        %v492 = vrot.slane %v471, %v491
        %v495 = vmul.f32 %v483, %v488
        %v496 = vmul.f32 %v482, %v492
        %497 = vst [vmem:[#allocation2] sm:$0xf] %v495
        %498 = vst [vmem:[#allocation2 + $0x8] sm:$0xf] %v496
        %s499 = scalar_lea.vmem %s0, 1
        %v500 = vld [vmem:[%s499] ss:$8 sm:$0x3]
        %501 = vrot.lane.b32.xlu0 %v470, 16
        %v502 = vpop.permute.xlu0 %501
        %503 = vrot.lane.b32.xlu0 %v473, 16
        %v504 = vpop.permute.xlu0 %503
        %vm505 = vcmp.lt.s32.totalorder %v480, 16
        %v506 = vsel %vm505, %v502, %v504
        %v507 = vsel %vm505, %v504, %v502
        %v509 = vlaneseq
        %v510 = vshrl.u32 %v509, 7
        %v511 = vsub.s32 0, %v510
        %v512 = vrot.slane %v500, %v511
        %v513 = vlaneseq
        %v514 = vshrl.u32 %v513, 7
        %v515 = vsub.s32 1, %v514
        %v516 = vrot.slane %v500, %v515
        %v519 = vmul.f32 %v507, %v512
        %v520 = vmul.f32 %v506, %v516
        %v523 = vrot.slane %v519, 4
        %v524 = vrot.slane %v520, 4
        %527 = vst [vmem:[#allocation2] sm:$0xf0] %v523
        %528 = vst [vmem:[#allocation2 + $0x8] sm:$0xf0] %v524
        %s529 = scalar_lea.vmem %s0, 2
        %v530 = vld [vmem:[%s529] ss:$8 sm:$0x3]
        %531 = vrot.lane.b32.xlu0 %v470, 15
        %v532 = vpop.permute.xlu0 %531
        %533 = vrot.lane.b32.xlu0 %v473, 15
        %v534 = vpop.permute.xlu0 %533
        %vm535 = vcmp.lt.s32.totalorder %v480, 15
        %v536 = vsel %vm535, %v532, %v534
        %v537 = vsel %vm535, %v534, %v532
        %v539 = vlaneseq
        %v540 = vshrl.u32 %v539, 7
        %v541 = vsub.s32 0, %v540
        %v542 = vrot.slane %v530, %v541
        %v543 = vlaneseq
        %v544 = vshrl.u32 %v543, 7
        %v545 = vsub.s32 1, %v544
        %v546 = vrot.slane %v530, %v545
        %v549 = vmul.f32 %v537, %v542
        %v550 = vmul.f32 %v536, %v546
        %551 = vst [vmem:[#allocation2 + $0x10] sm:$0xf] %v549
        %552 = vst [vmem:[#allocation2 + $0x18] sm:$0xf] %v550
        %s553 = scalar_lea.vmem %s0, 3
        %v554 = vld [vmem:[%s553] ss:$8 sm:$0x3]
        %555 = vrot.lane.b32.xlu0 %v470, 1
        %v556 = vpop.permute.xlu0 %555
        %557 = vrot.lane.b32.xlu0 %v473, 1
        %v558 = vpop.permute.xlu0 %557
        %vm559 = vcmp.lt.s32.totalorder %v480, 1
        %v560 = vsel %vm559, %v556, %v558
        %v561 = vsel %vm559, %v558, %v556
        %v563 = vlaneseq
        %v564 = vshrl.u32 %v563, 7
        %v565 = vsub.s32 0, %v564
        %v566 = vrot.slane %v554, %v565
        %v567 = vlaneseq
        %v568 = vshrl.u32 %v567, 7
        %v569 = vsub.s32 1, %v568
        %v570 = vrot.slane %v554, %v569
        %v573 = vmul.f32 %v561, %v566
        %v574 = vmul.f32 %v560, %v570
        %v577 = vrot.slane %v573, 4
        %v578 = vrot.slane %v574, 4
        %581 = vst [vmem:[#allocation2 + $0x10] sm:$0xf0] %v577
        %582 = vst [vmem:[#allocation2 + $0x18] sm:$0xf0] %v578
        %583 = vst [vmem:[#allocation2 + $0x20] sm:$0xf] %v470
        %584 = vst [vmem:[#allocation2 + $0x28] sm:$0xf] %v473
        %s585 = scalar_lea.vmem %s0, 5
        %v586 = vld [vmem:[%s585] ss:$8 sm:$0x3]
        %587 = vrot.lane.b32.xlu0 %v470, 127
        %v588 = vpop.permute.xlu0 %587
        %589 = vrot.lane.b32.xlu0 %v473, 127
        %v590 = vpop.permute.xlu0 %589
        %vm591 = vcmp.lt.s32.totalorder %v480, 127
        %v592 = vsel %vm591, %v588, %v590
        %v593 = vsel %vm591, %v590, %v588
        %v595 = vlaneseq
        %v596 = vshrl.u32 %v595, 7
        %v597 = vsub.s32 0, %v596
        %v598 = vrot.slane %v586, %v597
        %v599 = vlaneseq
        %v600 = vshrl.u32 %v599, 7
        %v601 = vsub.s32 1, %v600
        %v602 = vrot.slane %v586, %v601
        %v605 = vmul.f32 %v592, %v598
        %v606 = vmul.f32 %v593, %v602
        %v609 = vrot.slane %v605, 4
        %v610 = vrot.slane %v606, 4
        %613 = vst [vmem:[#allocation2 + $0x20] sm:$0xf0] %v609
        %614 = vst [vmem:[#allocation2 + $0x28] sm:$0xf0] %v610
        %s615 = scalar_lea.vmem %s0, 6
        %v616 = vld [vmem:[%s615] ss:$8 sm:$0x3]
        %617 = vrot.lane.b32.xlu0 %v470, 113
        %v618 = vpop.permute.xlu0 %617
        %619 = vrot.lane.b32.xlu0 %v473, 113
        %v620 = vpop.permute.xlu0 %619
        %vm621 = vcmp.lt.s32.totalorder %v480, 113
        %v622 = vsel %vm621, %v618, %v620
        %v623 = vsel %vm621, %v620, %v618
        %v625 = vlaneseq
        %v626 = vshrl.u32 %v625, 7
        %v627 = vsub.s32 0, %v626
        %v628 = vrot.slane %v616, %v627
        %v629 = vlaneseq
        %v630 = vshrl.u32 %v629, 7
        %v631 = vsub.s32 1, %v630
        %v632 = vrot.slane %v616, %v631
        %v635 = vmul.f32 %v622, %v628
        %v636 = vmul.f32 %v623, %v632
        %637 = vst [vmem:[#allocation2 + $0x30] sm:$0xf] %v635
        %638 = vst [vmem:[#allocation2 + $0x38] sm:$0xf] %v636
        %s639 = scalar_lea.vmem %s0, 7
        %v640 = vld [vmem:[%s639] ss:$8 sm:$0x3]
        %641 = vrot.lane.b32.xlu0 %v470, 112
        %v642 = vpop.permute.xlu0 %641
        %643 = vrot.lane.b32.xlu0 %v473, 112
        %v644 = vpop.permute.xlu0 %643
        %vm645 = vcmp.lt.s32.totalorder %v480, 112
        %v646 = vsel %vm645, %v642, %v644
        %v647 = vsel %vm645, %v644, %v642
        %v649 = vlaneseq
        %v650 = vshrl.u32 %v649, 7
        %v651 = vsub.s32 0, %v650
        %v652 = vrot.slane %v640, %v651
        %v653 = vlaneseq
        %v654 = vshrl.u32 %v653, 7
        %v655 = vsub.s32 1, %v654
        %v656 = vrot.slane %v640, %v655
        %v659 = vmul.f32 %v646, %v652
        %v660 = vmul.f32 %v647, %v656
        %v663 = vrot.slane %v659, 4
        %v664 = vrot.slane %v660, 4
        %667 = vst [vmem:[#allocation2 + $0x30] sm:$0xf0] %v663
        %668 = vst [vmem:[#allocation2 + $0x38] sm:$0xf0] %v664
        %s669 = scalar_lea.vmem %s0, 16
        %v670 = vld [vmem:[%s669] ss:$8 sm:$0x3]
        %671 = vrot.lane.b32.xlu0 %v470, 111
        %v672 = vpop.permute.xlu0 %671
        %673 = vrot.lane.b32.xlu0 %v473, 111
        %v674 = vpop.permute.xlu0 %673
        %vm675 = vcmp.lt.s32.totalorder %v480, 111
        %v676 = vsel %vm675, %v672, %v674
        %v677 = vsel %vm675, %v674, %v672
        %v679 = vlaneseq
        %v680 = vshrl.u32 %v679, 7
        %v681 = vsub.s32 0, %v680
        %v682 = vrot.slane %v670, %v681
        %v683 = vlaneseq
        %v684 = vshrl.u32 %v683, 7
        %v685 = vsub.s32 1, %v684
        %v686 = vrot.slane %v670, %v685
        %v689 = vmul.f32 %v676, %v682
        %v690 = vmul.f32 %v677, %v686
        %691 = vst [vmem:[#allocation2 + $0x40] sm:$0xf] %v689
        %692 = vst [vmem:[#allocation2 + $0x48] sm:$0xf] %v690
        %v693 = vld [vmem:[#allocation7] sm:$0xf]
        %v694 = vld [vmem:[#allocation2] sm:$0xff]
        %v695 = vld [vmem:[#allocation2 + $0x8] sm:$0xff]
        %v696 = vld [vmem:[#allocation2 + $0x10] sm:$0xff]
        %v697 = vld [vmem:[#allocation2 + $0x18] sm:$0xff]
        %v698 = vld [vmem:[#allocation2 + $0x20] sm:$0xff]
        %v699 = vld [vmem:[#allocation2 + $0x28] sm:$0xff]
        %v700 = vld [vmem:[#allocation2 + $0x30] sm:$0xff]
        %v701 = vld [vmem:[#allocation2 + $0x38] sm:$0xff]
        %v702 = vld [vmem:[#allocation2 + $0x40] sm:$0xf]
        %v703 = vld [vmem:[#allocation2 + $0x48] sm:$0xf]
        %v704 = vld [vmem:[%s3] sm:$0xf]
        %706 = vset.pattern.permute.xlu0 0
        %707 = vperm.xlu0 %706, %v704
        %v708 = vpop.permute.xlu0 %707
        %vm710 = vcmask 293888
        %v712 = vsel %vm710, %v693, 0
        %vm714 = vcmask 1043456
        %v716 = vsel %vm714, %v702, 0
        %v719 = vsel %vm714, %v703, 0
        %721 = vmatprep.subr.mxu0 %v695
        %722 = vmatpush1.msra.mxu0 %v694
        %723 = vmatprep.subr.mxu0 %v697
        %724 = vmatpush1.msra.mxu0 %v696
        %725 = vmatprep.subr.mxu0 %v699
        %726 = vmatpush1.msra.mxu0 %v698
        %727 = vmatprep.subr.mxu0 %v701
        %728 = vmatpush1.msra.mxu0 %v700
        %729 = vmatprep.subr.mxu0 %v719
        %730 = vmatpush1.msra.mxu0 %v716
        %731 = vmatprep.subr.mxu0 0.0
        %732 = vmatpush1.msra.mxu0 0.0
        %733 = vmatprep.subr.mxu0 0.0
        %734 = vmatpush1.msra.mxu0 0.0
        %735 = vmatprep.subr.mxu0 0.0
        %736 = vmatpush1.msra.mxu0 0.0
        %737 = vmatprep.subr.mxu0 0.0
        %738 = vmatpush1.msra.mxu0 0.0
        %739 = vmatprep.subr.mxu0 0.0
        %740 = vmatpush1.msra.mxu0 0.0
        %741 = vmatprep.subr.mxu0 0.0
        %742 = vmatpush1.msra.mxu0 0.0
        %743 = vmatprep.subr.mxu0 0.0
        %744 = vmatpush1.msra.mxu0 0.0
        %745 = vmatprep.subr.mxu0 0.0
        %746 = vmatpush1.msra.mxu0 0.0
        %747 = vmatprep.subr.mxu0 0.0
        %748 = vmatpush1.msra.mxu0 0.0
        %749 = vmatprep.subr.mxu0 0.0
        %750 = vmatpush1.msra.mxu0 0.0
        %751 = vmatprep.subr.mxu0 0.0
        %752 = vmatpush1.msra.mxu0 0.0
        %753 = vmatprep.subr.mxu0 0.0
        %754 = vmatpush1.msra.mxu0 0.0
        %755 = vmatprep.subr.mxu0 0.0
        %756 = vmatpush1.msra.mxu0 0.0
        %757 = vmatprep.subr.mxu0 0.0
        %758 = vmatpush1.msra.mxu0 0.0
        %759 = vmatprep.subr.mxu0 0.0
        %760 = vmatpush1.msra.mxu0 0.0
        %761 = vmatprep.subr.mxu0 0.0
        %762 = vmatpush1.msra.mxu0 0.0
        %763 = vmatprep.subr.mxu0 0.0
        %764 = vmatpush1.msra.mxu0 0.0
        %765 = vmatprep.subr.mxu0 0.0
        %766 = vmatpush1.msra.mxu0 0.0
        %767 = vmatprep.subr.mxu0 0.0
        %768 = vmatpush1.msra.mxu0 0.0
        %769 = vmatprep.subr.mxu0 0.0
        %770 = vmatpush1.msra.mxu0 0.0
        %771 = vmatprep.subr.mxu0 0.0
        %772 = vmatpush1.msra.mxu0 0.0
        %773 = vmatprep.subr.mxu0 0.0
        %774 = vmatpush1.msra.mxu0 0.0
        %775 = vmatprep.subr.mxu0 0.0
        %776 = vmatpush1.msra.mxu0 0.0
        %777 = vmatprep.subr.mxu0 0.0
        %778 = vmatpush1.msra.mxu0 0.0
        %779 = vmatprep.subr.mxu0 0.0
        %780 = vmatpush1.msra.mxu0 0.0
        %781 = vmatprep.subr.mxu0 0.0
        %782 = vmatpush1.msra.mxu0 0.0
        %783 = vmatprep.subr.mxu0 0.0
        %784 = vmatpush1.msra.mxu0 0.0
        %785 = vmatprep.mubr.f32.mxu0 0.0
        %786 = vmatmul.mubr.f32.gmra.mrb[0].mxu0 %v712
        %v787 = vpop.f32.mrb[0].mxu0
        %v788 = vadd.f32 %v708, %v787
        %v789 = vpop.f32.mrb[0].mxu0
        %v790 = vadd.f32 %v708, %v789
        %791 = vdwg.mxu0
        %v792 = vsel %vm714, %v788, 0.0
        %v793 = vsel %vm714, %v790, 0.0
        %v794 = vadd.f32 %v792, %v793
        %795 = vadd.xlane.f32.xlu0 %v794
        %v796 = vpop.xlane.xlu0 %795
        %v797 = vmul.f32 %v796, 0.00390625
        %v798 = vsel %vm714, %v788, -inf
        %v799 = vsel %vm714, %v790, -inf
        %v800 = vmax.f32 %v798, %v799
        %801 = vmax.xlane.f32.xlu0 %v800
        %v802 = vpop.xlane.xlu0 %801
        %vm803 = vcmp.eq.s32.totalorder %v480, 0
        %v804 = vsel %vm803, %v797, %v802
        %v805 = vld [vmem:[#allocation9] sm:$0xf]
        %v806 = vld [vmem:[%s5] sm:$0xf]
        %808 = vset.pattern.permute.xlu0 0
        %809 = vperm.xlu0 %808, %v806
        %v810 = vpop.permute.xlu0 %809
        %vm812 = vcmask 31744
        %v814 = vsel %vm812, %v805, 0
        %v817 = vsel %vm714, %v804, 0
        %819 = vmatprep.subr.mxu0 0.0
        %820 = vmatpush1.msra.mxu0 %v817
        %821 = vmatprep.subr.mxu0 0.0
        %822 = vmatpush1.msra.mxu0 0.0
        %823 = vmatprep.subr.mxu0 0.0
        %824 = vmatpush1.msra.mxu0 0.0
        %825 = vmatprep.subr.mxu0 0.0
        %826 = vmatpush1.msra.mxu0 0.0
        %827 = vmatprep.subr.mxu0 0.0
        %828 = vmatpush1.msra.mxu0 0.0
        %829 = vmatprep.subr.mxu0 0.0
        %830 = vmatpush1.msra.mxu0 0.0
        %831 = vmatprep.subr.mxu0 0.0
        %832 = vmatpush1.msra.mxu0 0.0
        %833 = vmatprep.subr.mxu0 0.0
        %834 = vmatpush1.msra.mxu0 0.0
        %835 = vmatprep.subr.mxu0 0.0
        %836 = vmatpush1.msra.mxu0 0.0
        %837 = vmatprep.subr.mxu0 0.0
        %838 = vmatpush1.msra.mxu0 0.0
        %839 = vmatprep.subr.mxu0 0.0
        %840 = vmatpush1.msra.mxu0 0.0
        %841 = vmatprep.subr.mxu0 0.0
        %842 = vmatpush1.msra.mxu0 0.0
        %843 = vmatprep.subr.mxu0 0.0
        %844 = vmatpush1.msra.mxu0 0.0
        %845 = vmatprep.subr.mxu0 0.0
        %846 = vmatpush1.msra.mxu0 0.0
        %847 = vmatprep.subr.mxu0 0.0
        %848 = vmatpush1.msra.mxu0 0.0
        %849 = vmatprep.subr.mxu0 0.0
        %850 = vmatpush1.msra.mxu0 0.0
        %851 = vmatprep.subr.mxu0 0.0
        %852 = vmatpush1.msra.mxu0 0.0
        %853 = vmatprep.subr.mxu0 0.0
        %854 = vmatpush1.msra.mxu0 0.0
        %855 = vmatprep.subr.mxu0 0.0
        %856 = vmatpush1.msra.mxu0 0.0
        %857 = vmatprep.subr.mxu0 0.0
        %858 = vmatpush1.msra.mxu0 0.0
        %859 = vmatprep.subr.mxu0 0.0
        %860 = vmatpush1.msra.mxu0 0.0
        %861 = vmatprep.subr.mxu0 0.0
        %862 = vmatpush1.msra.mxu0 0.0
        %863 = vmatprep.subr.mxu0 0.0
        %864 = vmatpush1.msra.mxu0 0.0
        %865 = vmatprep.subr.mxu0 0.0
        %866 = vmatpush1.msra.mxu0 0.0
        %867 = vmatprep.subr.mxu0 0.0
        %868 = vmatpush1.msra.mxu0 0.0
        %869 = vmatprep.subr.mxu0 0.0
        %870 = vmatpush1.msra.mxu0 0.0
        %871 = vmatprep.subr.mxu0 0.0
        %872 = vmatpush1.msra.mxu0 0.0
        %873 = vmatprep.subr.mxu0 0.0
        %874 = vmatpush1.msra.mxu0 0.0
        %875 = vmatprep.subr.mxu0 0.0
        %876 = vmatpush1.msra.mxu0 0.0
        %877 = vmatprep.subr.mxu0 0.0
        %878 = vmatpush1.msra.mxu0 0.0
        %879 = vmatprep.subr.mxu0 0.0
        %880 = vmatpush1.msra.mxu0 0.0
        %881 = vmatprep.subr.mxu0 0.0
        %882 = vmatpush1.msra.mxu0 0.0
        %883 = vmatprep.mubr.f32.mxu0 0.0
        %884 = vmatmul.mubr.f32.gmra.mrb[0].mxu0 %v814
        %v885 = vpop.f32.mrb[0].mxu0
        %v886 = vadd.f32 %v810, %v885
        %v887 = vpop.f32.mrb[0].mxu0
        %888 = vdwg.mxu0
        %v889 = vmax.f32 %v886, 0.0
        %v890 = vld [vmem:[#allocation10] sm:$0xf]
        %v891 = vld [vmem:[%s7] sm:$0xf]
        %893 = vset.pattern.permute.xlu0 0
        %894 = vperm.xlu0 %893, %v891
        %v895 = vpop.permute.xlu0 %894
        %v898 = vsel %vm812, %v890, 0
        %v901 = vsel %vm714, %v889, 0
        %903 = vmatprep.subr.mxu0 0.0
        %904 = vmatpush1.msra.mxu0 %v901
        %905 = vmatprep.subr.mxu0 0.0
        %906 = vmatpush1.msra.mxu0 0.0
        %907 = vmatprep.subr.mxu0 0.0
        %908 = vmatpush1.msra.mxu0 0.0
        %909 = vmatprep.subr.mxu0 0.0
        %910 = vmatpush1.msra.mxu0 0.0
        %911 = vmatprep.subr.mxu0 0.0
        %912 = vmatpush1.msra.mxu0 0.0
        %913 = vmatprep.subr.mxu0 0.0
        %914 = vmatpush1.msra.mxu0 0.0
        %915 = vmatprep.subr.mxu0 0.0
        %916 = vmatpush1.msra.mxu0 0.0
        %917 = vmatprep.subr.mxu0 0.0
        %918 = vmatpush1.msra.mxu0 0.0
        %919 = vmatprep.subr.mxu0 0.0
        %920 = vmatpush1.msra.mxu0 0.0
        %921 = vmatprep.subr.mxu0 0.0
        %922 = vmatpush1.msra.mxu0 0.0
        %923 = vmatprep.subr.mxu0 0.0
        %924 = vmatpush1.msra.mxu0 0.0
        %925 = vmatprep.subr.mxu0 0.0
        %926 = vmatpush1.msra.mxu0 0.0
        %927 = vmatprep.subr.mxu0 0.0
        %928 = vmatpush1.msra.mxu0 0.0
        %929 = vmatprep.subr.mxu0 0.0
        %930 = vmatpush1.msra.mxu0 0.0
        %931 = vmatprep.subr.mxu0 0.0
        %932 = vmatpush1.msra.mxu0 0.0
        %933 = vmatprep.subr.mxu0 0.0
        %934 = vmatpush1.msra.mxu0 0.0
        %935 = vmatprep.subr.mxu0 0.0
        %936 = vmatpush1.msra.mxu0 0.0
        %937 = vmatprep.subr.mxu0 0.0
        %938 = vmatpush1.msra.mxu0 0.0
        %939 = vmatprep.subr.mxu0 0.0
        %940 = vmatpush1.msra.mxu0 0.0
        %941 = vmatprep.subr.mxu0 0.0
        %942 = vmatpush1.msra.mxu0 0.0
        %943 = vmatprep.subr.mxu0 0.0
        %944 = vmatpush1.msra.mxu0 0.0
        %945 = vmatprep.subr.mxu0 0.0
        %946 = vmatpush1.msra.mxu0 0.0
        %947 = vmatprep.subr.mxu0 0.0
        %948 = vmatpush1.msra.mxu0 0.0
        %949 = vmatprep.subr.mxu0 0.0
        %950 = vmatpush1.msra.mxu0 0.0
        %951 = vmatprep.subr.mxu0 0.0
        %952 = vmatpush1.msra.mxu0 0.0
        %953 = vmatprep.subr.mxu0 0.0
        %954 = vmatpush1.msra.mxu0 0.0
        %955 = vmatprep.subr.mxu0 0.0
        %956 = vmatpush1.msra.mxu0 0.0
        %957 = vmatprep.subr.mxu0 0.0
        %958 = vmatpush1.msra.mxu0 0.0
        %959 = vmatprep.subr.mxu0 0.0
        %960 = vmatpush1.msra.mxu0 0.0
        %961 = vmatprep.subr.mxu0 0.0
        %962 = vmatpush1.msra.mxu0 0.0
        %963 = vmatprep.subr.mxu0 0.0
        %964 = vmatpush1.msra.mxu0 0.0
        %965 = vmatprep.subr.mxu0 0.0
        %966 = vmatpush1.msra.mxu0 0.0
        %967 = vmatprep.mubr.f32.mxu0 0.0
        %968 = vmatmul.mubr.f32.gmra.mrb[0].mxu0 %v898
        %v969 = vpop.f32.mrb[0].mxu0
        %v970 = vadd.f32 %v895, %v969
        %v971 = vpop.f32.mrb[0].mxu0
        %972 = vdwg.mxu0
        %974 = vrot.lane.b32.xlu0 %v970, 127
        %v975 = vpop.permute.xlu0 %974
        %v977 = vadd.f32 %v970, %v975
        %v978 = vsub.f32 0.0, %v977
        %v979 = vmul.f32 %v978, 1.442695
        %v980 = vpow.pop %v979
        %v981 = vadd.f32 %v980, 1.0
        %v982 = vrcp.pop %v981
        %984 = vset.pattern.permute.xlu0 0
        %985 = vperm.xlu0 %984, %v982
        %v986 = vpop.permute.xlu0 %985
        %v988 = vmul.f32 %v788, %v986
        %v989 = vmul.f32 %v790, %v986
        %v990 = vsel %vm714, %v988, 0.0
        %v991 = vrot.slane %v990, 4
        %v992 = vadd.f32 %v990, %v991
        %v993 = vrot.slane %v992, 2
        %v994 = vadd.f32 %v992, %v993
        %v995 = vrot.slane %v994, 1
        %v996 = vadd.f32 %v994, %v995
        %v997 = vsel %vm714, %v989, 0.0
        %v998 = vrot.slane %v997, 4
        %v999 = vadd.f32 %v997, %v998
        %v1000 = vrot.slane %v999, 2
        %v1001 = vadd.f32 %v999, %v1000
        %v1002 = vrot.slane %v1001, 1
        %v1003 = vadd.f32 %v1001, %v1002
        %v1004 = vmul.f32 %v996, 0.25
        %v1005 = vmul.f32 %v1003, 0.25
        %v1006 = vsel %vm714, %v988, -inf
        %v1007 = vrot.slane %v1006, 4
        %v1008 = vmax.f32 %v1006, %v1007
        %v1009 = vrot.slane %v1008, 2
        %v1010 = vmax.f32 %v1008, %v1009
        %v1011 = vrot.slane %v1010, 1
        %v1012 = vmax.f32 %v1010, %v1011
        %v1013 = vsel %vm714, %v989, -inf
        %v1014 = vrot.slane %v1013, 4
        %v1015 = vmax.f32 %v1013, %v1014
        %v1016 = vrot.slane %v1015, 2
        %v1017 = vmax.f32 %v1015, %v1016
        %v1018 = vrot.slane %v1017, 1
        %v1019 = vmax.f32 %v1017, %v1018
        %v1020 = vld [vmem:[%s9] sm:$0xff]
        %v1021 = vld [vmem:[%s9 + $0x8] sm:$0xff]
        %v1022 = vld [vmem:[%s0] ss:$8 sm:$0x3]
        %1023 = vrot.lane.b32.xlu0 %v1004, 17
        %v1024 = vpop.permute.xlu0 %1023
        %1025 = vrot.lane.b32.xlu0 %v1005, 17
        %v1026 = vpop.permute.xlu0 %1025
        %v1027 = vsel %vm481, %v1024, %v1026
        %v1028 = vsel %vm481, %v1026, %v1024
        %v1030 = vlaneseq
        %v1031 = vshrl.u32 %v1030, 7
        %v1032 = vsub.s32 0, %v1031
        %v1033 = vrot.slane %v1022, %v1032
        %v1034 = vlaneseq
        %v1035 = vshrl.u32 %v1034, 7
        %v1036 = vsub.s32 1, %v1035
        %v1037 = vrot.slane %v1022, %v1036
        %v1040 = vmul.f32 %v1028, %v1033
        %v1041 = vmul.f32 %v1027, %v1037
        %1042 = vrot.lane.b32.xlu0 %v1012, 17
        %v1043 = vpop.permute.xlu0 %1042
        %1044 = vrot.lane.b32.xlu0 %v1019, 17
        %v1045 = vpop.permute.xlu0 %1044
        %v1046 = vsel %vm481, %v1043, %v1045
        %v1047 = vsel %vm481, %v1045, %v1043
        %v1048 = vmul.f32 %v1047, %v1033
        %v1049 = vmul.f32 %v1046, %v1037
        %v1050 = vld [vmem:[%s8] sm:$0xff]
        %v1051 = vld [vmem:[%s8 + $0x8] sm:$0xff]
        %1053 = vset.pattern.permute.xlu0 0
        %1054 = vperm.xlu0 %1053, %v1050
        %v1055 = vpop.permute.xlu0 %1054
        %1058 = vset.pattern.permute.xlu0 0
        %1059 = vperm.xlu0 %1058, %v1051
        %v1060 = vpop.permute.xlu0 %1059
        %v1062 = vlaneseq
        %v1063 = vshrl.u32 %v1062, 7
        %v1064 = vsub.s32 0, %v1063
        %v1065 = vrot.slane %v1040, %v1064
        %v1066 = vlaneseq
        %v1067 = vshrl.u32 %v1066, 7
        %v1068 = vsub.s32 0, %v1067
        %v1069 = vrot.slane %v1041, %v1068
        %v1070 = vmul.f32 %v1055, %v1065
        %v1071 = vmul.f32 %v1055, %v1069
        %v1072 = vmul.f32 %v1060, %v1065
        %v1073 = vmul.f32 %v1060, %v1069
        %1075 = vset.pattern.permute.xlu0 0
        %1076 = vperm.xlu0 %1075, %v1020
        %v1077 = vpop.permute.xlu0 %1076
        %1080 = vset.pattern.permute.xlu0 0
        %1081 = vperm.xlu0 %1080, %v1021
        %v1082 = vpop.permute.xlu0 %1081
        %v1084 = vadd.f32 %v1077, %v1070
        %v1085 = vadd.f32 %v1077, %v1071
        %v1086 = vadd.f32 %v1082, %v1072
        %v1087 = vadd.f32 %v1082, %v1073
        %1088 = vset.pattern.permute.xlu0 1
        %1089 = vperm.xlu0 %1088, %v1050
        %v1090 = vpop.permute.xlu0 %1089
        %1092 = vset.pattern.permute.xlu0 1
        %1093 = vperm.xlu0 %1092, %v1051
        %v1094 = vpop.permute.xlu0 %1093
        %v1096 = vlaneseq
        %v1097 = vshrl.u32 %v1096, 7
        %v1098 = vsub.s32 0, %v1097
        %v1099 = vrot.slane %v1048, %v1098
        %v1100 = vlaneseq
        %v1101 = vshrl.u32 %v1100, 7
        %v1102 = vsub.s32 0, %v1101
        %v1103 = vrot.slane %v1049, %v1102
        %v1104 = vmul.f32 %v1090, %v1099
        %v1105 = vmul.f32 %v1090, %v1103
        %v1106 = vmul.f32 %v1094, %v1099
        %v1107 = vmul.f32 %v1094, %v1103
        %v1108 = vadd.f32 %v1084, %v1104
        %v1109 = vadd.f32 %v1085, %v1105
        %v1110 = vadd.f32 %v1086, %v1106
        %v1111 = vadd.f32 %v1087, %v1107
        %v1112 = vld [vmem:[%s499] ss:$8 sm:$0x3]
        %1113 = vrot.lane.b32.xlu0 %v1004, 16
        %v1114 = vpop.permute.xlu0 %1113
        %1115 = vrot.lane.b32.xlu0 %v1005, 16
        %v1116 = vpop.permute.xlu0 %1115
        %v1117 = vsel %vm505, %v1114, %v1116
        %v1118 = vsel %vm505, %v1116, %v1114
        %v1120 = vlaneseq
        %v1121 = vshrl.u32 %v1120, 7
        %v1122 = vsub.s32 0, %v1121
        %v1123 = vrot.slane %v1112, %v1122
        %v1124 = vlaneseq
        %v1125 = vshrl.u32 %v1124, 7
        %v1126 = vsub.s32 1, %v1125
        %v1127 = vrot.slane %v1112, %v1126
        %v1130 = vmul.f32 %v1118, %v1123
        %v1131 = vmul.f32 %v1117, %v1127
        %1132 = vrot.lane.b32.xlu0 %v1012, 16
        %v1133 = vpop.permute.xlu0 %1132
        %1134 = vrot.lane.b32.xlu0 %v1019, 16
        %v1135 = vpop.permute.xlu0 %1134
        %v1136 = vsel %vm505, %v1133, %v1135
        %v1137 = vsel %vm505, %v1135, %v1133
        %v1138 = vmul.f32 %v1137, %v1123
        %v1139 = vmul.f32 %v1136, %v1127
        %1140 = vset.pattern.permute.xlu0 2
        %1141 = vperm.xlu0 %1140, %v1050
        %v1142 = vpop.permute.xlu0 %1141
        %1144 = vset.pattern.permute.xlu0 2
        %1145 = vperm.xlu0 %1144, %v1051
        %v1146 = vpop.permute.xlu0 %1145
        %v1148 = vlaneseq
        %v1149 = vshrl.u32 %v1148, 7
        %v1150 = vsub.s32 0, %v1149
        %v1151 = vrot.slane %v1130, %v1150
        %v1152 = vlaneseq
        %v1153 = vshrl.u32 %v1152, 7
        %v1154 = vsub.s32 0, %v1153
        %v1155 = vrot.slane %v1131, %v1154
        %v1156 = vmul.f32 %v1142, %v1151
        %v1157 = vmul.f32 %v1142, %v1155
        %v1158 = vmul.f32 %v1146, %v1151
        %v1159 = vmul.f32 %v1146, %v1155
        %v1160 = vadd.f32 %v1108, %v1156
        %v1161 = vadd.f32 %v1109, %v1157
        %v1162 = vadd.f32 %v1110, %v1158
        %v1163 = vadd.f32 %v1111, %v1159
        %1164 = vset.pattern.permute.xlu0 3
        %1165 = vperm.xlu0 %1164, %v1050
        %v1166 = vpop.permute.xlu0 %1165
        %1168 = vset.pattern.permute.xlu0 3
        %1169 = vperm.xlu0 %1168, %v1051
        %v1170 = vpop.permute.xlu0 %1169
        %v1172 = vlaneseq
        %v1173 = vshrl.u32 %v1172, 7
        %v1174 = vsub.s32 0, %v1173
        %v1175 = vrot.slane %v1138, %v1174
        %v1176 = vlaneseq
        %v1177 = vshrl.u32 %v1176, 7
        %v1178 = vsub.s32 0, %v1177
        %v1179 = vrot.slane %v1139, %v1178
        %v1180 = vmul.f32 %v1166, %v1175
        %v1181 = vmul.f32 %v1166, %v1179
        %v1182 = vmul.f32 %v1170, %v1175
        %v1183 = vmul.f32 %v1170, %v1179
        %v1184 = vadd.f32 %v1160, %v1180
        %v1185 = vadd.f32 %v1161, %v1181
        %v1186 = vadd.f32 %v1162, %v1182
        %v1187 = vadd.f32 %v1163, %v1183
        %v1188 = vld [vmem:[%s529] ss:$8 sm:$0x3]
        %1189 = vrot.lane.b32.xlu0 %v1004, 15
        %v1190 = vpop.permute.xlu0 %1189
        %1191 = vrot.lane.b32.xlu0 %v1005, 15
        %v1192 = vpop.permute.xlu0 %1191
        %v1193 = vsel %vm535, %v1190, %v1192
        %v1194 = vsel %vm535, %v1192, %v1190
        %v1196 = vlaneseq
        %v1197 = vshrl.u32 %v1196, 7
        %v1198 = vsub.s32 0, %v1197
        %v1199 = vrot.slane %v1188, %v1198
        %v1200 = vlaneseq
        %v1201 = vshrl.u32 %v1200, 7
        %v1202 = vsub.s32 1, %v1201
        %v1203 = vrot.slane %v1188, %v1202
        %v1206 = vmul.f32 %v1194, %v1199
        %v1207 = vmul.f32 %v1193, %v1203
        %1208 = vrot.lane.b32.xlu0 %v1012, 15
        %v1209 = vpop.permute.xlu0 %1208
        %1210 = vrot.lane.b32.xlu0 %v1019, 15
        %v1211 = vpop.permute.xlu0 %1210
        %v1212 = vsel %vm535, %v1209, %v1211
        %v1213 = vsel %vm535, %v1211, %v1209
        %v1214 = vmul.f32 %v1213, %v1199
        %v1215 = vmul.f32 %v1212, %v1203
        %1216 = vset.pattern.permute.xlu0 4
        %1217 = vperm.xlu0 %1216, %v1050
        %v1218 = vpop.permute.xlu0 %1217
        %1220 = vset.pattern.permute.xlu0 4
        %1221 = vperm.xlu0 %1220, %v1051
        %v1222 = vpop.permute.xlu0 %1221
        %v1224 = vlaneseq
        %v1225 = vshrl.u32 %v1224, 7
        %v1226 = vsub.s32 0, %v1225
        %v1227 = vrot.slane %v1206, %v1226
        %v1228 = vlaneseq
        %v1229 = vshrl.u32 %v1228, 7
        %v1230 = vsub.s32 0, %v1229
        %v1231 = vrot.slane %v1207, %v1230
        %v1232 = vmul.f32 %v1218, %v1227
        %v1233 = vmul.f32 %v1218, %v1231
        %v1234 = vmul.f32 %v1222, %v1227
        %v1235 = vmul.f32 %v1222, %v1231
        %v1236 = vadd.f32 %v1184, %v1232
        %v1237 = vadd.f32 %v1185, %v1233
        %v1238 = vadd.f32 %v1186, %v1234
        %v1239 = vadd.f32 %v1187, %v1235
        %1240 = vset.pattern.permute.xlu0 5
        %1241 = vperm.xlu0 %1240, %v1050
        %v1242 = vpop.permute.xlu0 %1241
        %1244 = vset.pattern.permute.xlu0 5
        %1245 = vperm.xlu0 %1244, %v1051
        %v1246 = vpop.permute.xlu0 %1245
        %v1248 = vlaneseq
        %v1249 = vshrl.u32 %v1248, 7
        %v1250 = vsub.s32 0, %v1249
        %v1251 = vrot.slane %v1214, %v1250
        %v1252 = vlaneseq
        %v1253 = vshrl.u32 %v1252, 7
        %v1254 = vsub.s32 0, %v1253
        %v1255 = vrot.slane %v1215, %v1254
        %v1256 = vmul.f32 %v1242, %v1251
        %v1257 = vmul.f32 %v1242, %v1255
        %v1258 = vmul.f32 %v1246, %v1251
        %v1259 = vmul.f32 %v1246, %v1255
        %v1260 = vadd.f32 %v1236, %v1256
        %v1261 = vadd.f32 %v1237, %v1257
        %v1262 = vadd.f32 %v1238, %v1258
        %v1263 = vadd.f32 %v1239, %v1259
        %v1264 = vld [vmem:[%s553] ss:$8 sm:$0x3]
        %1265 = vrot.lane.b32.xlu0 %v1004, 1
        %v1266 = vpop.permute.xlu0 %1265
        %1267 = vrot.lane.b32.xlu0 %v1005, 1
        %v1268 = vpop.permute.xlu0 %1267
        %v1269 = vsel %vm559, %v1266, %v1268
        %v1270 = vsel %vm559, %v1268, %v1266
        %v1272 = vlaneseq
        %v1273 = vshrl.u32 %v1272, 7
        %v1274 = vsub.s32 0, %v1273
        %v1275 = vrot.slane %v1264, %v1274
        %v1276 = vlaneseq
        %v1277 = vshrl.u32 %v1276, 7
        %v1278 = vsub.s32 1, %v1277
        %v1279 = vrot.slane %v1264, %v1278
        %v1282 = vmul.f32 %v1270, %v1275
        %v1283 = vmul.f32 %v1269, %v1279
        %1284 = vrot.lane.b32.xlu0 %v1012, 1
        %v1285 = vpop.permute.xlu0 %1284
        %1286 = vrot.lane.b32.xlu0 %v1019, 1
        %v1287 = vpop.permute.xlu0 %1286
        %v1288 = vsel %vm559, %v1285, %v1287
        %v1289 = vsel %vm559, %v1287, %v1285
        %v1290 = vmul.f32 %v1289, %v1275
        %v1291 = vmul.f32 %v1288, %v1279
        %1292 = vset.pattern.permute.xlu0 6
        %1293 = vperm.xlu0 %1292, %v1050
        %v1294 = vpop.permute.xlu0 %1293
        %1296 = vset.pattern.permute.xlu0 6
        %1297 = vperm.xlu0 %1296, %v1051
        %v1298 = vpop.permute.xlu0 %1297
        %v1300 = vlaneseq
        %v1301 = vshrl.u32 %v1300, 7
        %v1302 = vsub.s32 0, %v1301
        %v1303 = vrot.slane %v1282, %v1302
        %v1304 = vlaneseq
        %v1305 = vshrl.u32 %v1304, 7
        %v1306 = vsub.s32 0, %v1305
        %v1307 = vrot.slane %v1283, %v1306
        %v1308 = vmul.f32 %v1294, %v1303
        %v1309 = vmul.f32 %v1294, %v1307
        %v1310 = vmul.f32 %v1298, %v1303
        %v1311 = vmul.f32 %v1298, %v1307
        %v1312 = vadd.f32 %v1260, %v1308
        %v1313 = vadd.f32 %v1261, %v1309
        %v1314 = vadd.f32 %v1262, %v1310
        %v1315 = vadd.f32 %v1263, %v1311
        %1316 = vset.pattern.permute.xlu0 7
        %1317 = vperm.xlu0 %1316, %v1050
        %v1318 = vpop.permute.xlu0 %1317
        %1320 = vset.pattern.permute.xlu0 7
        %1321 = vperm.xlu0 %1320, %v1051
        %v1322 = vpop.permute.xlu0 %1321
        %v1324 = vlaneseq
        %v1325 = vshrl.u32 %v1324, 7
        %v1326 = vsub.s32 0, %v1325
        %v1327 = vrot.slane %v1290, %v1326
        %v1328 = vlaneseq
        %v1329 = vshrl.u32 %v1328, 7
        %v1330 = vsub.s32 0, %v1329
        %v1331 = vrot.slane %v1291, %v1330
        %v1332 = vmul.f32 %v1318, %v1327
        %v1333 = vmul.f32 %v1318, %v1331
        %v1334 = vmul.f32 %v1322, %v1327
        %v1335 = vmul.f32 %v1322, %v1331
        %v1336 = vadd.f32 %v1312, %v1332
        %v1337 = vadd.f32 %v1313, %v1333
        %v1338 = vadd.f32 %v1314, %v1334
        %v1339 = vadd.f32 %v1315, %v1335
        %1340 = vset.pattern.permute.xlu0 8
        %1341 = vperm.xlu0 %1340, %v1050
        %v1342 = vpop.permute.xlu0 %1341
        %1344 = vset.pattern.permute.xlu0 8
        %1345 = vperm.xlu0 %1344, %v1051
        %v1346 = vpop.permute.xlu0 %1345
        %v1348 = vmul.f32 %v1342, %v1004
        %v1349 = vmul.f32 %v1342, %v1005
        %v1350 = vmul.f32 %v1346, %v1004
        %v1351 = vmul.f32 %v1346, %v1005
        %v1352 = vadd.f32 %v1336, %v1348
        %v1353 = vadd.f32 %v1337, %v1349
        %v1354 = vadd.f32 %v1338, %v1350
        %v1355 = vadd.f32 %v1339, %v1351
        %1356 = vset.pattern.permute.xlu0 9
        %1357 = vperm.xlu0 %1356, %v1050
        %v1358 = vpop.permute.xlu0 %1357
        %1360 = vset.pattern.permute.xlu0 9
        %1361 = vperm.xlu0 %1360, %v1051
        %v1362 = vpop.permute.xlu0 %1361
        %v1364 = vmul.f32 %v1358, %v1012
        %v1365 = vmul.f32 %v1358, %v1019
        %v1366 = vmul.f32 %v1362, %v1012
        %v1367 = vmul.f32 %v1362, %v1019
        %v1368 = vadd.f32 %v1352, %v1364
        %v1369 = vadd.f32 %v1353, %v1365
        %v1370 = vadd.f32 %v1354, %v1366
        %v1371 = vadd.f32 %v1355, %v1367
        %v1372 = vld [vmem:[%s585] ss:$8 sm:$0x3]
        %1373 = vrot.lane.b32.xlu0 %v1004, 127
        %v1374 = vpop.permute.xlu0 %1373
        %1375 = vrot.lane.b32.xlu0 %v1005, 127
        %v1376 = vpop.permute.xlu0 %1375
        %v1377 = vsel %vm591, %v1374, %v1376
        %v1378 = vsel %vm591, %v1376, %v1374
        %v1380 = vlaneseq
        %v1381 = vshrl.u32 %v1380, 7
        %v1382 = vsub.s32 0, %v1381
        %v1383 = vrot.slane %v1372, %v1382
        %v1384 = vlaneseq
        %v1385 = vshrl.u32 %v1384, 7
        %v1386 = vsub.s32 1, %v1385
        %v1387 = vrot.slane %v1372, %v1386
        %v1390 = vmul.f32 %v1377, %v1383
        %v1391 = vmul.f32 %v1378, %v1387
        %1392 = vrot.lane.b32.xlu0 %v1012, 127
        %v1393 = vpop.permute.xlu0 %1392
        %1394 = vrot.lane.b32.xlu0 %v1019, 127
        %v1395 = vpop.permute.xlu0 %1394
        %v1396 = vsel %vm591, %v1393, %v1395
        %v1397 = vsel %vm591, %v1395, %v1393
        %v1398 = vmul.f32 %v1396, %v1383
        %v1399 = vmul.f32 %v1397, %v1387
        %1400 = vset.pattern.permute.xlu0 10
        %1401 = vperm.xlu0 %1400, %v1050
        %v1402 = vpop.permute.xlu0 %1401
        %1404 = vset.pattern.permute.xlu0 10
        %1405 = vperm.xlu0 %1404, %v1051
        %v1406 = vpop.permute.xlu0 %1405
        %v1408 = vlaneseq
        %v1409 = vshrl.u32 %v1408, 7
        %v1410 = vsub.s32 0, %v1409
        %v1411 = vrot.slane %v1390, %v1410
        %v1412 = vlaneseq
        %v1413 = vshrl.u32 %v1412, 7
        %v1414 = vsub.s32 0, %v1413
        %v1415 = vrot.slane %v1391, %v1414
        %v1416 = vmul.f32 %v1402, %v1411
        %v1417 = vmul.f32 %v1402, %v1415
        %v1418 = vmul.f32 %v1406, %v1411
        %v1419 = vmul.f32 %v1406, %v1415
        %v1420 = vadd.f32 %v1368, %v1416
        %v1421 = vadd.f32 %v1369, %v1417
        %v1422 = vadd.f32 %v1370, %v1418
        %v1423 = vadd.f32 %v1371, %v1419
        %1424 = vset.pattern.permute.xlu0 11
        %1425 = vperm.xlu0 %1424, %v1050
        %v1426 = vpop.permute.xlu0 %1425
        %1428 = vset.pattern.permute.xlu0 11
        %1429 = vperm.xlu0 %1428, %v1051
        %v1430 = vpop.permute.xlu0 %1429
        %v1432 = vlaneseq
        %v1433 = vshrl.u32 %v1432, 7
        %v1434 = vsub.s32 0, %v1433
        %v1435 = vrot.slane %v1398, %v1434
        %v1436 = vlaneseq
        %v1437 = vshrl.u32 %v1436, 7
        %v1438 = vsub.s32 0, %v1437
        %v1439 = vrot.slane %v1399, %v1438
        %v1440 = vmul.f32 %v1426, %v1435
        %v1441 = vmul.f32 %v1426, %v1439
        %v1442 = vmul.f32 %v1430, %v1435
        %v1443 = vmul.f32 %v1430, %v1439
        %v1444 = vadd.f32 %v1420, %v1440
        %v1445 = vadd.f32 %v1421, %v1441
        %v1446 = vadd.f32 %v1422, %v1442
        %v1447 = vadd.f32 %v1423, %v1443
        %v1448 = vld [vmem:[%s615] ss:$8 sm:$0x3]
        %1449 = vrot.lane.b32.xlu0 %v1004, 113
        %v1450 = vpop.permute.xlu0 %1449
        %1451 = vrot.lane.b32.xlu0 %v1005, 113
        %v1452 = vpop.permute.xlu0 %1451
        %v1453 = vsel %vm621, %v1450, %v1452
        %v1454 = vsel %vm621, %v1452, %v1450
        %v1456 = vlaneseq
        %v1457 = vshrl.u32 %v1456, 7
        %v1458 = vsub.s32 0, %v1457
        %v1459 = vrot.slane %v1448, %v1458
        %v1460 = vlaneseq
        %v1461 = vshrl.u32 %v1460, 7
        %v1462 = vsub.s32 1, %v1461
        %v1463 = vrot.slane %v1448, %v1462
        %v1466 = vmul.f32 %v1453, %v1459
        %v1467 = vmul.f32 %v1454, %v1463
        %1468 = vrot.lane.b32.xlu0 %v1012, 113
        %v1469 = vpop.permute.xlu0 %1468
        %1470 = vrot.lane.b32.xlu0 %v1019, 113
        %v1471 = vpop.permute.xlu0 %1470
        %v1472 = vsel %vm621, %v1469, %v1471
        %v1473 = vsel %vm621, %v1471, %v1469
        %v1474 = vmul.f32 %v1472, %v1459
        %v1475 = vmul.f32 %v1473, %v1463
        %1476 = vset.pattern.permute.xlu0 12
        %1477 = vperm.xlu0 %1476, %v1050
        %v1478 = vpop.permute.xlu0 %1477
        %1480 = vset.pattern.permute.xlu0 12
        %1481 = vperm.xlu0 %1480, %v1051
        %v1482 = vpop.permute.xlu0 %1481
        %v1484 = vlaneseq
        %v1485 = vshrl.u32 %v1484, 7
        %v1486 = vsub.s32 0, %v1485
        %v1487 = vrot.slane %v1466, %v1486
        %v1488 = vlaneseq
        %v1489 = vshrl.u32 %v1488, 7
        %v1490 = vsub.s32 0, %v1489
        %v1491 = vrot.slane %v1467, %v1490
        %v1492 = vmul.f32 %v1478, %v1487
        %v1493 = vmul.f32 %v1478, %v1491
        %v1494 = vmul.f32 %v1482, %v1487
        %v1495 = vmul.f32 %v1482, %v1491
        %v1496 = vadd.f32 %v1444, %v1492
        %v1497 = vadd.f32 %v1445, %v1493
        %v1498 = vadd.f32 %v1446, %v1494
        %v1499 = vadd.f32 %v1447, %v1495
        %1500 = vset.pattern.permute.xlu0 13
        %1501 = vperm.xlu0 %1500, %v1050
        %v1502 = vpop.permute.xlu0 %1501
        %1504 = vset.pattern.permute.xlu0 13
        %1505 = vperm.xlu0 %1504, %v1051
        %v1506 = vpop.permute.xlu0 %1505
        %v1508 = vlaneseq
        %v1509 = vshrl.u32 %v1508, 7
        %v1510 = vsub.s32 0, %v1509
        %v1511 = vrot.slane %v1474, %v1510
        %v1512 = vlaneseq
        %v1513 = vshrl.u32 %v1512, 7
        %v1514 = vsub.s32 0, %v1513
        %v1515 = vrot.slane %v1475, %v1514
        %v1516 = vmul.f32 %v1502, %v1511
        %v1517 = vmul.f32 %v1502, %v1515
        %v1518 = vmul.f32 %v1506, %v1511
        %v1519 = vmul.f32 %v1506, %v1515
        %v1520 = vadd.f32 %v1496, %v1516
        %v1521 = vadd.f32 %v1497, %v1517
        %v1522 = vadd.f32 %v1498, %v1518
        %v1523 = vadd.f32 %v1499, %v1519
        %v1524 = vld [vmem:[%s639] ss:$8 sm:$0x3]
        %1525 = vrot.lane.b32.xlu0 %v1004, 112
        %v1526 = vpop.permute.xlu0 %1525
        %1527 = vrot.lane.b32.xlu0 %v1005, 112
        %v1528 = vpop.permute.xlu0 %1527
        %v1529 = vsel %vm645, %v1526, %v1528
        %v1530 = vsel %vm645, %v1528, %v1526
        %v1532 = vlaneseq
        %v1533 = vshrl.u32 %v1532, 7
        %v1534 = vsub.s32 0, %v1533
        %v1535 = vrot.slane %v1524, %v1534
        %v1536 = vlaneseq
        %v1537 = vshrl.u32 %v1536, 7
        %v1538 = vsub.s32 1, %v1537
        %v1539 = vrot.slane %v1524, %v1538
        %v1542 = vmul.f32 %v1529, %v1535
        %v1543 = vmul.f32 %v1530, %v1539
        %1544 = vrot.lane.b32.xlu0 %v1012, 112
        %v1545 = vpop.permute.xlu0 %1544
        %1546 = vrot.lane.b32.xlu0 %v1019, 112
        %v1547 = vpop.permute.xlu0 %1546
        %v1548 = vsel %vm645, %v1545, %v1547
        %v1549 = vsel %vm645, %v1547, %v1545
        %v1550 = vmul.f32 %v1548, %v1535
        %v1551 = vmul.f32 %v1549, %v1539
        %1552 = vset.pattern.permute.xlu0 14
        %1553 = vperm.xlu0 %1552, %v1050
        %v1554 = vpop.permute.xlu0 %1553
        %1556 = vset.pattern.permute.xlu0 14
        %1557 = vperm.xlu0 %1556, %v1051
        %v1558 = vpop.permute.xlu0 %1557
        %v1560 = vlaneseq
        %v1561 = vshrl.u32 %v1560, 7
        %v1562 = vsub.s32 0, %v1561
        %v1563 = vrot.slane %v1542, %v1562
        %v1564 = vlaneseq
        %v1565 = vshrl.u32 %v1564, 7
        %v1566 = vsub.s32 0, %v1565
        %v1567 = vrot.slane %v1543, %v1566
        %v1568 = vmul.f32 %v1554, %v1563
        %v1569 = vmul.f32 %v1554, %v1567
        %v1570 = vmul.f32 %v1558, %v1563
        %v1571 = vmul.f32 %v1558, %v1567
        %v1572 = vadd.f32 %v1520, %v1568
        %v1573 = vadd.f32 %v1521, %v1569
        %v1574 = vadd.f32 %v1522, %v1570
        %v1575 = vadd.f32 %v1523, %v1571
        %1576 = vset.pattern.permute.xlu0 15
        %1577 = vperm.xlu0 %1576, %v1050
        %v1578 = vpop.permute.xlu0 %1577
        %1580 = vset.pattern.permute.xlu0 15
        %1581 = vperm.xlu0 %1580, %v1051
        %v1582 = vpop.permute.xlu0 %1581
        %v1584 = vlaneseq
        %v1585 = vshrl.u32 %v1584, 7
        %v1586 = vsub.s32 0, %v1585
        %v1587 = vrot.slane %v1550, %v1586
        %v1588 = vlaneseq
        %v1589 = vshrl.u32 %v1588, 7
        %v1590 = vsub.s32 0, %v1589
        %v1591 = vrot.slane %v1551, %v1590
        %v1592 = vmul.f32 %v1578, %v1587
        %v1593 = vmul.f32 %v1578, %v1591
        %v1594 = vmul.f32 %v1582, %v1587
        %v1595 = vmul.f32 %v1582, %v1591
        %v1596 = vadd.f32 %v1572, %v1592
        %v1597 = vadd.f32 %v1573, %v1593
        %v1598 = vadd.f32 %v1574, %v1594
        %v1599 = vadd.f32 %v1575, %v1595
        %v1600 = vld [vmem:[%s669] ss:$8 sm:$0x3]
        %1601 = vrot.lane.b32.xlu0 %v1004, 111
        %v1602 = vpop.permute.xlu0 %1601
        %1603 = vrot.lane.b32.xlu0 %v1005, 111
        %v1604 = vpop.permute.xlu0 %1603
        %v1605 = vsel %vm675, %v1602, %v1604
        %v1606 = vsel %vm675, %v1604, %v1602
        %v1608 = vlaneseq
        %v1609 = vshrl.u32 %v1608, 7
        %v1610 = vsub.s32 0, %v1609
        %v1611 = vrot.slane %v1600, %v1610
        %v1612 = vlaneseq
        %v1613 = vshrl.u32 %v1612, 7
        %v1614 = vsub.s32 1, %v1613
        %v1615 = vrot.slane %v1600, %v1614
        %v1618 = vmul.f32 %v1605, %v1611
        %v1619 = vmul.f32 %v1606, %v1615
        %1620 = vrot.lane.b32.xlu0 %v1012, 111
        %v1621 = vpop.permute.xlu0 %1620
        %1622 = vrot.lane.b32.xlu0 %v1019, 111
        %v1623 = vpop.permute.xlu0 %1622
        %v1624 = vsel %vm675, %v1621, %v1623
        %v1625 = vsel %vm675, %v1623, %v1621
        %v1626 = vmul.f32 %v1624, %v1611
        %v1627 = vmul.f32 %v1625, %v1615
        %1628 = vset.pattern.permute.xlu0 16
        %1629 = vperm.xlu0 %1628, %v1050
        %v1630 = vpop.permute.xlu0 %1629
        %1632 = vset.pattern.permute.xlu0 16
        %1633 = vperm.xlu0 %1632, %v1051
        %v1634 = vpop.permute.xlu0 %1633
        %v1636 = vlaneseq
        %v1637 = vshrl.u32 %v1636, 7
        %v1638 = vsub.s32 0, %v1637
        %v1639 = vrot.slane %v1618, %v1638
        %v1640 = vlaneseq
        %v1641 = vshrl.u32 %v1640, 7
        %v1642 = vsub.s32 0, %v1641
        %v1643 = vrot.slane %v1619, %v1642
        %v1644 = vmul.f32 %v1630, %v1639
        %v1645 = vmul.f32 %v1630, %v1643
        %v1646 = vmul.f32 %v1634, %v1639
        %v1647 = vmul.f32 %v1634, %v1643
        %v1648 = vadd.f32 %v1596, %v1644
        %v1649 = vadd.f32 %v1597, %v1645
        %v1650 = vadd.f32 %v1598, %v1646
        %v1651 = vadd.f32 %v1599, %v1647
        %1652 = vset.pattern.permute.xlu0 17
        %1653 = vperm.xlu0 %1652, %v1050
        %v1654 = vpop.permute.xlu0 %1653
        %1656 = vset.pattern.permute.xlu0 17
        %1657 = vperm.xlu0 %1656, %v1051
        %v1658 = vpop.permute.xlu0 %1657
        %v1660 = vlaneseq
        %v1661 = vshrl.u32 %v1660, 7
        %v1662 = vsub.s32 0, %v1661
        %v1663 = vrot.slane %v1626, %v1662
        %v1664 = vlaneseq
        %v1665 = vshrl.u32 %v1664, 7
        %v1666 = vsub.s32 0, %v1665
        %v1667 = vrot.slane %v1627, %v1666
        %v1668 = vmul.f32 %v1654, %v1663
        %v1669 = vmul.f32 %v1654, %v1667
        %v1670 = vmul.f32 %v1658, %v1663
        %v1671 = vmul.f32 %v1658, %v1667
        %v1672 = vadd.f32 %v1648, %v1668
        %v1673 = vadd.f32 %v1649, %v1669
        %v1674 = vadd.f32 %v1650, %v1670
        %v1675 = vadd.f32 %v1651, %v1671
        %v1676 = vmax.f32 %v1672, 0.0
        %v1677 = vmax.f32 %v1673, 0.0
        %v1678 = vmax.f32 %v1674, 0.0
        %v1679 = vmax.f32 %v1675, 0.0
        %v1680 = vld [vmem:[#allocation3] sm:$0x1]
        %v1681 = vld [vmem:[%s10] sm:$0xff]
        %v1682 = vld [vmem:[%s10 + $0x8] sm:$0xff]
        %1684 = vset.pattern.permute.xlu0 0
        %1685 = vperm.xlu0 %1684, %v1681
        %v1686 = vpop.permute.xlu0 %1685
        %1689 = vset.pattern.permute.xlu0 0
        %1690 = vperm.xlu0 %1689, %v1682
        %v1691 = vpop.permute.xlu0 %1690
        %v1693 = vmul.f32 %v1686, %v1676
        %v1694 = vmul.f32 %v1686, %v1677
        %v1695 = vmul.f32 %v1691, %v1678
        %v1696 = vmul.f32 %v1691, %v1679
        %v1697 = vadd.f32 %v1693, %v1695
        %v1698 = vrot.slane %v1697, 4
        %v1699 = vadd.f32 %v1697, %v1698
        %v1700 = vrot.slane %v1699, 2
        %v1701 = vadd.f32 %v1699, %v1700
        %v1702 = vrot.slane %v1701, 1
        %v1703 = vadd.f32 %v1701, %v1702
        %v1704 = vadd.f32 %v1694, %v1696
        %v1705 = vrot.slane %v1704, 4
        %v1706 = vadd.f32 %v1704, %v1705
        %v1707 = vrot.slane %v1706, 2
        %v1708 = vadd.f32 %v1706, %v1707
        %v1709 = vrot.slane %v1708, 1
        %v1710 = vadd.f32 %v1708, %v1709
        %1711 = vrot.lane.b32.xlu0 %v1703, 17
        %v1712 = vpop.permute.xlu0 %1711
        %1713 = vrot.lane.b32.xlu0 %v1710, 17
        %v1714 = vpop.permute.xlu0 %1713
        %v1715 = vsel %vm481, %v1712, %v1714
        %v1716 = vsel %vm481, %v1714, %v1712
        %v1717 = vmul.f32 %v1716, %v1033
        %v1718 = vmul.f32 %v1715, %v1037
        %1720 = vset.pattern.permute.xlu0 0
        %1721 = vperm.xlu0 %1720, %v1680
        %v1722 = vpop.permute.xlu0 %1721
        %v1724 = vlaneseq
        %v1725 = vshrl.u32 %v1724, 7
        %v1726 = vsub.s32 0, %v1725
        %v1727 = vrot.slane %v1722, %v1726
        %v1728 = vadd.f32 %v1727, %v1717
        %v1729 = vadd.f32 %v1727, %v1718
        %1730 = vset.pattern.permute.xlu0 1
        %1731 = vperm.xlu0 %1730, %v1681
        %v1732 = vpop.permute.xlu0 %1731
        %1734 = vset.pattern.permute.xlu0 1
        %1735 = vperm.xlu0 %1734, %v1682
        %v1736 = vpop.permute.xlu0 %1735
        %v1738 = vmul.f32 %v1732, %v1676
        %v1739 = vmul.f32 %v1732, %v1677
        %v1740 = vmul.f32 %v1736, %v1678
        %v1741 = vmul.f32 %v1736, %v1679
        %v1742 = vadd.f32 %v1738, %v1740
        %v1743 = vrot.slane %v1742, 4
        %v1744 = vadd.f32 %v1742, %v1743
        %v1745 = vrot.slane %v1744, 2
        %v1746 = vadd.f32 %v1744, %v1745
        %v1747 = vrot.slane %v1746, 1
        %v1748 = vadd.f32 %v1746, %v1747
        %v1749 = vadd.f32 %v1739, %v1741
        %v1750 = vrot.slane %v1749, 4
        %v1751 = vadd.f32 %v1749, %v1750
        %v1752 = vrot.slane %v1751, 2
        %v1753 = vadd.f32 %v1751, %v1752
        %v1754 = vrot.slane %v1753, 1
        %v1755 = vadd.f32 %v1753, %v1754
        %1756 = vrot.lane.b32.xlu0 %v1748, 16
        %v1757 = vpop.permute.xlu0 %1756
        %1758 = vrot.lane.b32.xlu0 %v1755, 16
        %v1759 = vpop.permute.xlu0 %1758
        %v1760 = vsel %vm505, %v1757, %v1759
        %v1761 = vsel %vm505, %v1759, %v1757
        %v1762 = vmul.f32 %v1761, %v1123
        %v1763 = vmul.f32 %v1760, %v1127
        %v1764 = vadd.f32 %v1728, %v1762
        %v1765 = vadd.f32 %v1729, %v1763
        %1766 = vset.pattern.permute.xlu0 2
        %1767 = vperm.xlu0 %1766, %v1681
        %v1768 = vpop.permute.xlu0 %1767
        %1770 = vset.pattern.permute.xlu0 2
        %1771 = vperm.xlu0 %1770, %v1682
        %v1772 = vpop.permute.xlu0 %1771
        %v1774 = vmul.f32 %v1768, %v1676
        %v1775 = vmul.f32 %v1768, %v1677
        %v1776 = vmul.f32 %v1772, %v1678
        %v1777 = vmul.f32 %v1772, %v1679
        %v1778 = vadd.f32 %v1774, %v1776
        %v1779 = vrot.slane %v1778, 4
        %v1780 = vadd.f32 %v1778, %v1779
        %v1781 = vrot.slane %v1780, 2
        %v1782 = vadd.f32 %v1780, %v1781
        %v1783 = vrot.slane %v1782, 1
        %v1784 = vadd.f32 %v1782, %v1783
        %v1785 = vadd.f32 %v1775, %v1777
        %v1786 = vrot.slane %v1785, 4
        %v1787 = vadd.f32 %v1785, %v1786
        %v1788 = vrot.slane %v1787, 2
        %v1789 = vadd.f32 %v1787, %v1788
        %v1790 = vrot.slane %v1789, 1
        %v1791 = vadd.f32 %v1789, %v1790
        %1792 = vrot.lane.b32.xlu0 %v1784, 15
        %v1793 = vpop.permute.xlu0 %1792
        %1794 = vrot.lane.b32.xlu0 %v1791, 15
        %v1795 = vpop.permute.xlu0 %1794
        %v1796 = vsel %vm535, %v1793, %v1795
        %v1797 = vsel %vm535, %v1795, %v1793
        %v1798 = vmul.f32 %v1797, %v1199
        %v1799 = vmul.f32 %v1796, %v1203
        %v1800 = vadd.f32 %v1764, %v1798
        %v1801 = vadd.f32 %v1765, %v1799
        %1802 = vset.pattern.permute.xlu0 3
        %1803 = vperm.xlu0 %1802, %v1681
        %v1804 = vpop.permute.xlu0 %1803
        %1806 = vset.pattern.permute.xlu0 3
        %1807 = vperm.xlu0 %1806, %v1682
        %v1808 = vpop.permute.xlu0 %1807
        %v1810 = vmul.f32 %v1804, %v1676
        %v1811 = vmul.f32 %v1804, %v1677
        %v1812 = vmul.f32 %v1808, %v1678
        %v1813 = vmul.f32 %v1808, %v1679
        %v1814 = vadd.f32 %v1810, %v1812
        %v1815 = vrot.slane %v1814, 4
        %v1816 = vadd.f32 %v1814, %v1815
        %v1817 = vrot.slane %v1816, 2
        %v1818 = vadd.f32 %v1816, %v1817
        %v1819 = vrot.slane %v1818, 1
        %v1820 = vadd.f32 %v1818, %v1819
        %v1821 = vadd.f32 %v1811, %v1813
        %v1822 = vrot.slane %v1821, 4
        %v1823 = vadd.f32 %v1821, %v1822
        %v1824 = vrot.slane %v1823, 2
        %v1825 = vadd.f32 %v1823, %v1824
        %v1826 = vrot.slane %v1825, 1
        %v1827 = vadd.f32 %v1825, %v1826
        %1828 = vrot.lane.b32.xlu0 %v1820, 1
        %v1829 = vpop.permute.xlu0 %1828
        %1830 = vrot.lane.b32.xlu0 %v1827, 1
        %v1831 = vpop.permute.xlu0 %1830
        %v1832 = vsel %vm559, %v1829, %v1831
        %v1833 = vsel %vm559, %v1831, %v1829
        %v1834 = vmul.f32 %v1833, %v1275
        %v1835 = vmul.f32 %v1832, %v1279
        %v1836 = vadd.f32 %v1800, %v1834
        %v1837 = vadd.f32 %v1801, %v1835
        %1838 = vset.pattern.permute.xlu0 4
        %1839 = vperm.xlu0 %1838, %v1681
        %v1840 = vpop.permute.xlu0 %1839
        %1842 = vset.pattern.permute.xlu0 4
        %1843 = vperm.xlu0 %1842, %v1682
        %v1844 = vpop.permute.xlu0 %1843
        %v1846 = vmul.f32 %v1840, %v1676
        %v1847 = vmul.f32 %v1840, %v1677
        %v1848 = vmul.f32 %v1844, %v1678
        %v1849 = vmul.f32 %v1844, %v1679
        %v1850 = vadd.f32 %v1846, %v1848
        %v1851 = vrot.slane %v1850, 4
        %v1852 = vadd.f32 %v1850, %v1851
        %v1853 = vrot.slane %v1852, 2
        %v1854 = vadd.f32 %v1852, %v1853
        %v1855 = vrot.slane %v1854, 1
        %v1856 = vadd.f32 %v1854, %v1855
        %v1857 = vadd.f32 %v1847, %v1849
        %v1858 = vrot.slane %v1857, 4
        %v1859 = vadd.f32 %v1857, %v1858
        %v1860 = vrot.slane %v1859, 2
        %v1861 = vadd.f32 %v1859, %v1860
        %v1862 = vrot.slane %v1861, 1
        %v1863 = vadd.f32 %v1861, %v1862
        %v1864 = vadd.f32 %v1836, %v1856
        %v1865 = vadd.f32 %v1837, %v1863
        %1866 = vset.pattern.permute.xlu0 5
        %1867 = vperm.xlu0 %1866, %v1681
        %v1868 = vpop.permute.xlu0 %1867
        %1870 = vset.pattern.permute.xlu0 5
        %1871 = vperm.xlu0 %1870, %v1682
        %v1872 = vpop.permute.xlu0 %1871
        %v1874 = vmul.f32 %v1868, %v1676
        %v1875 = vmul.f32 %v1868, %v1677
        %v1876 = vmul.f32 %v1872, %v1678
        %v1877 = vmul.f32 %v1872, %v1679
        %v1878 = vadd.f32 %v1874, %v1876
        %v1879 = vrot.slane %v1878, 4
        %v1880 = vadd.f32 %v1878, %v1879
        %v1881 = vrot.slane %v1880, 2
        %v1882 = vadd.f32 %v1880, %v1881
        %v1883 = vrot.slane %v1882, 1
        %v1884 = vadd.f32 %v1882, %v1883
        %v1885 = vadd.f32 %v1875, %v1877
        %v1886 = vrot.slane %v1885, 4
        %v1887 = vadd.f32 %v1885, %v1886
        %v1888 = vrot.slane %v1887, 2
        %v1889 = vadd.f32 %v1887, %v1888
        %v1890 = vrot.slane %v1889, 1
        %v1891 = vadd.f32 %v1889, %v1890
        %1892 = vrot.lane.b32.xlu0 %v1884, 127
        %v1893 = vpop.permute.xlu0 %1892
        %1894 = vrot.lane.b32.xlu0 %v1891, 127
        %v1895 = vpop.permute.xlu0 %1894
        %v1896 = vsel %vm591, %v1893, %v1895
        %v1897 = vsel %vm591, %v1895, %v1893
        %v1898 = vmul.f32 %v1896, %v1383
        %v1899 = vmul.f32 %v1897, %v1387
        %v1900 = vadd.f32 %v1864, %v1898
        %v1901 = vadd.f32 %v1865, %v1899
        %1902 = vset.pattern.permute.xlu0 6
        %1903 = vperm.xlu0 %1902, %v1681
        %v1904 = vpop.permute.xlu0 %1903
        %1906 = vset.pattern.permute.xlu0 6
        %1907 = vperm.xlu0 %1906, %v1682
        %v1908 = vpop.permute.xlu0 %1907
        %v1910 = vmul.f32 %v1904, %v1676
        %v1911 = vmul.f32 %v1904, %v1677
        %v1912 = vmul.f32 %v1908, %v1678
        %v1913 = vmul.f32 %v1908, %v1679
        %v1914 = vadd.f32 %v1910, %v1912
        %v1915 = vrot.slane %v1914, 4
        %v1916 = vadd.f32 %v1914, %v1915
        %v1917 = vrot.slane %v1916, 2
        %v1918 = vadd.f32 %v1916, %v1917
        %v1919 = vrot.slane %v1918, 1
        %v1920 = vadd.f32 %v1918, %v1919
        %v1921 = vadd.f32 %v1911, %v1913
        %v1922 = vrot.slane %v1921, 4
        %v1923 = vadd.f32 %v1921, %v1922
        %v1924 = vrot.slane %v1923, 2
        %v1925 = vadd.f32 %v1923, %v1924
        %v1926 = vrot.slane %v1925, 1
        %v1927 = vadd.f32 %v1925, %v1926
        %1928 = vrot.lane.b32.xlu0 %v1920, 113
        %v1929 = vpop.permute.xlu0 %1928
        %1930 = vrot.lane.b32.xlu0 %v1927, 113
        %v1931 = vpop.permute.xlu0 %1930
        %v1932 = vsel %vm621, %v1929, %v1931
        %v1933 = vsel %vm621, %v1931, %v1929
        %v1934 = vmul.f32 %v1932, %v1459
        %v1935 = vmul.f32 %v1933, %v1463
        %v1936 = vadd.f32 %v1900, %v1934
        %v1937 = vadd.f32 %v1901, %v1935
        %1938 = vset.pattern.permute.xlu0 7
        %1939 = vperm.xlu0 %1938, %v1681
        %v1940 = vpop.permute.xlu0 %1939
        %1942 = vset.pattern.permute.xlu0 7
        %1943 = vperm.xlu0 %1942, %v1682
        %v1944 = vpop.permute.xlu0 %1943
        %v1946 = vmul.f32 %v1940, %v1676
        %v1947 = vmul.f32 %v1940, %v1677
        %v1948 = vmul.f32 %v1944, %v1678
        %v1949 = vmul.f32 %v1944, %v1679
        %v1950 = vadd.f32 %v1946, %v1948
        %v1951 = vrot.slane %v1950, 4
        %v1952 = vadd.f32 %v1950, %v1951
        %v1953 = vrot.slane %v1952, 2
        %v1954 = vadd.f32 %v1952, %v1953
        %v1955 = vrot.slane %v1954, 1
        %v1956 = vadd.f32 %v1954, %v1955
        %v1957 = vadd.f32 %v1947, %v1949
        %v1958 = vrot.slane %v1957, 4
        %v1959 = vadd.f32 %v1957, %v1958
        %v1960 = vrot.slane %v1959, 2
        %v1961 = vadd.f32 %v1959, %v1960
        %v1962 = vrot.slane %v1961, 1
        %v1963 = vadd.f32 %v1961, %v1962
        %1964 = vrot.lane.b32.xlu0 %v1956, 112
        %v1965 = vpop.permute.xlu0 %1964
        %1966 = vrot.lane.b32.xlu0 %v1963, 112
        %v1967 = vpop.permute.xlu0 %1966
        %v1968 = vsel %vm645, %v1965, %v1967
        %v1969 = vsel %vm645, %v1967, %v1965
        %v1970 = vmul.f32 %v1968, %v1535
        %v1971 = vmul.f32 %v1969, %v1539
        %v1972 = vadd.f32 %v1936, %v1970
        %v1973 = vadd.f32 %v1937, %v1971
        %1974 = vset.pattern.permute.xlu0 8
        %1975 = vperm.xlu0 %1974, %v1681
        %v1976 = vpop.permute.xlu0 %1975
        %1978 = vset.pattern.permute.xlu0 8
        %1979 = vperm.xlu0 %1978, %v1682
        %v1980 = vpop.permute.xlu0 %1979
        %v1982 = vmul.f32 %v1976, %v1676
        %v1983 = vmul.f32 %v1976, %v1677
        %v1984 = vmul.f32 %v1980, %v1678
        %v1985 = vmul.f32 %v1980, %v1679
        %v1986 = vadd.f32 %v1982, %v1984
        %v1987 = vrot.slane %v1986, 4
        %v1988 = vadd.f32 %v1986, %v1987
        %v1989 = vrot.slane %v1988, 2
        %v1990 = vadd.f32 %v1988, %v1989
        %v1991 = vrot.slane %v1990, 1
        %v1992 = vadd.f32 %v1990, %v1991
        %v1993 = vadd.f32 %v1983, %v1985
        %v1994 = vrot.slane %v1993, 4
        %v1995 = vadd.f32 %v1993, %v1994
        %v1996 = vrot.slane %v1995, 2
        %v1997 = vadd.f32 %v1995, %v1996
        %v1998 = vrot.slane %v1997, 1
        %v1999 = vadd.f32 %v1997, %v1998
        %2000 = vrot.lane.b32.xlu0 %v1992, 111
        %v2001 = vpop.permute.xlu0 %2000
        %2002 = vrot.lane.b32.xlu0 %v1999, 111
        %v2003 = vpop.permute.xlu0 %2002
        %v2004 = vsel %vm675, %v2001, %v2003
        %v2005 = vsel %vm675, %v2003, %v2001
        %v2006 = vmul.f32 %v2004, %v1611
        %v2007 = vmul.f32 %v2005, %v1615
        %v2008 = vadd.f32 %v1972, %v2006
        %v2009 = vadd.f32 %v1973, %v2007
        %v2010 = vsub.f32 0.0, %v2008
        %v2011 = vsub.f32 0.0, %v2009
        %v2012 = vmul.f32 %v2010, 1.442695
        %v2013 = vpow.pop %v2012
        %v2014 = vmul.f32 %v2011, 1.442695
        %v2015 = vpow.pop %v2014
        %v2016 = vadd.f32 %v2013, 1.0
        %v2017 = vadd.f32 %v2015, 1.0
        %v2018 = vrcp.pop %v2016
        %v2019 = vrcp.pop %v2017
        %v2020 = vlaneseq
        %v2021 = vshrl.u32 %v2020, 7
        %v2022 = vsub.s32 0, %v2021
        %v2023 = vrot.slane %v2018, %v2022
        %v2024 = vlaneseq
        %v2025 = vshrl.u32 %v2024, 7
        %v2026 = vsub.s32 0, %v2025
        %v2027 = vrot.slane %v2019, %v2026
        %v2028 = vmul.f32 %v988, %v2023
        %v2029 = vmul.f32 %v989, %v2027
        %v2032 = vcombine.low %v2028, %v2029
        %2034 = vst [vmem:[%s469] sm:$0xff] %v2032
        %s2035 = sand.u32 %s298, 1
        %s2036 = scalar_lea.sflag [#allocation6], %s2035
        %s2037 = sand.u32 %s298, 1
        %s2038 = smul.addr %s2037, 8
        %s2039 = scalar_lea.vmem [#allocation12], %s2038
        // Predicated region
        $region85: #{tpu_custom_call.1} parent=67 // pred_check
          %p2040 = pneg %p308
        $region86: #{tpu_custom_call.1} parent=67 // pred_check_branch
          %2042 = sbr.rel (%p2040) target = $region88
        $region87: #{tpu_custom_call.1} parent=67 // pred_region
          %s2044 = ssub.s32 128, 128
          %2045 = vsyncadd %s2036, %s2044
          %s2046 = smul.addr %s33, 2
          %s2047 = smul.addr %s2046, 64
          %s2048 = scalar_lea.hbm %s12, %s2047
          %s2050 = sshll.u32 %s2039, 4
          %s2051 = int_to_ptr.vmem [resolvable:$true] %s2050
          %2053 = dma.vmem_to_hbm [thread:$0]  %s2051, 128, %s2048, %s2036
        $region88: #{tpu_custom_call.1} parent=67 // pred_fallthru
          _
      $region68: #{tpu_custom_call.1} parent=5 // pred_fallthru
        _
      %p2054 = scmp.le.s32.totalorder 2, %s28
      // Predicated region
      $region89: #{tpu_custom_call.1} parent=5 // pred_check
        %p2055 = pneg %p2054
      $region90: #{tpu_custom_call.1} parent=5 // pred_check_branch
        %2057 = sbr.rel (%p2055) target = $region92
      $region91: #{tpu_custom_call.1} parent=5 // pred_region
        %s2058 = ssub.s32 %s28, 2
        // Predicated region
        $region93: #{tpu_custom_call.1} parent=91 // pred_check
          %p2059 = pneg %p314
        $region94: #{tpu_custom_call.1} parent=91 // pred_check_branch
          %2061 = sbr.rel (%p2059) target = $region96
        $region95: #{tpu_custom_call.1} parent=91 // pred_region
          %s2062 = sand.u32 %s299, 1
          %s2063 = scalar_lea.sflag [#allocation6], %s2062
          %s2064 = sand.u32 %s299, 1
          %s2065 = smul.addr %s2064, 8
          %s2066 = scalar_lea.vmem [#allocation12], %s2065
          %2067 = dma.done %s2063, 128
        $region96: #{tpu_custom_call.1} parent=91 // pred_fallthru
          _
      $region92: #{tpu_custom_call.1} parent=5 // pred_fallthru
        _
    $region6: #{tpu_custom_call.1} parent=1 // loop_footer
      %s32 = sadd.s32 1, %s28
    $region7: #{tpu_custom_call.1} parent=1 // loop_footer_branch
      %27 = sbr.rel target = $region3
    $region8: #{tpu_custom_call.1} parent=1 // loop_exit
      _
    %2068 = vsyncpa [#allocation5], 1
    %s2069 = scalar_lea.sflag [#allocation5], 1
    %2070 = vsyncpa %s2069, 1
    %2071 = vsyncpa [#allocation8], 1
    %2072 = vsyncpa [#allocation11], 1
    %2073 = vsyncpa [#allocation6], 1
    %s2074 = scalar_lea.sflag [#allocation6], 1
    %2075 = vsyncpa %s2074, 1

</llo_original>
